<compile_context>
chip_gen: v7x
topology: tpu7x:2x2x1
jax: 0.10.0
libtpu: 0.0.40
codegen_flags: <defaults>
</compile_context>

<pallas_src>
import math
from functools import partial

import jax
import jax.numpy as jnp
from jax import lax
from jax.experimental import pallas as pl
from jax.experimental.pallas import tpu as pltpu


# ----------------------------------------------------------------------------
# Kernel: mean only (std is x-independent and handled in the wrapper)
# ----------------------------------------------------------------------------
def _policy_mean_kernel(x_ref, K_ref, kb_ref, out_ref):
    # x_ref : (TQ, B, dx)      query states for this block of queries
    # K_ref : (TQ, du, dx)     pre-gathered gains  K[ns]
    # kb_ref: (TQ, 1, du)      pre-gathered biases k[ns]
    # out_ref: (B, TQ*du)      lane-dense output block (TQ*du multiple of 128)
    TQ = x_ref.shape[0]
    du = K_ref.shape[1]
    # Static unroll over the TQ tiny matmuls; contraction is dx-with-dx so the
    # MXU is fed directly (no in-kernel K.T / XLU transpose).
    for q in range(TQ):
        m = lax.dot_general(
            x_ref[q], K_ref[q],
            dimension_numbers=(((1,), (1,)), ((), ())),
            preferred_element_type=jnp.float32,
        ) + kb_ref[q]                                   # (B, du) + (1, du)
        out_ref[:, q * du:(q + 1) * du] = m.astype(out_ref.dtype)


# ----------------------------------------------------------------------------
# Helpers
# ----------------------------------------------------------------------------
def _choose_tq(du, target_lanes=128):
    """Smallest TQ such that TQ*du is a multiple of 128 (lane-dense writeback)."""
    if du % target_lanes == 0:
        return 1
    return target_lanes // math.gcd(target_lanes, du)


# ----------------------------------------------------------------------------
# Batched wrappers (one pallas_call for Q queries)
# ----------------------------------------------------------------------------
@partial(jax.jit, static_argnames=("tq",))
def policy_conditional_mean_batched(xs, ns, K, k_bias, *, tq=None):
    """xs: (Q, B, dx), ns: (Q,) int32.  Returns mean: (Q, B, du)."""
    Q, B, dx = xs.shape
    H, du, _ = K.shape
    ns = jnp.clip(jnp.asarray(ns, dtype=jnp.int32), 0, H - 1)
    out_dtype = jnp.result_type(xs.dtype, K.dtype)

    TQ = _choose_tq(du) if tq is None else int(tq)
    NQ = -(-Q // TQ)          # cdiv
    Qp = NQ * TQ
    pad = Qp - Q

    # Pre-gather the per-query policy rows once in XLA (tables are only KBs);
    # removes per-step gain-slice DMAs and the dynamic index_map entirely.
    Kn = jnp.take(K, ns, axis=0)            # (Q, du, dx)
    kbn = jnp.take(k_bias, ns, axis=0)      # (Q, 1, du)

    if pad:
        xs = jnp.pad(xs, ((0, pad), (0, 0), (0, 0)))
        Kn = jnp.pad(Kn, ((0, pad), (0, 0), (0, 0)))
        kbn = jnp.pad(kbn, ((0, pad), (0, 0), (0, 0)))

    out = pl.pallas_call(
        _policy_mean_kernel,
        out_shape=jax.ShapeDtypeStruct((NQ, B, TQ * du), out_dtype),
        grid_spec=pltpu.PrefetchScalarGridSpec(
            num_scalar_prefetch=0,
            grid=(NQ,),
            in_specs=[
                pl.BlockSpec((TQ, B, dx), lambda i: (i, 0, 0)),
                pl.BlockSpec((TQ, du, dx), lambda i: (i, 0, 0)),
                pl.BlockSpec((TQ, 1, du), lambda i: (i, 0, 0)),
            ],
            out_specs=pl.BlockSpec((pl.Squeezed(), B, TQ * du),
                                   lambda i: (i, 0, 0)),
        ),
        compiler_params=pltpu.CompilerParams(
            dimension_semantics=("parallel",)),
    )(xs, Kn, kbn)

    # (NQ, B, TQ*du) -> (Q, B, du): wrapper-side layout plumbing only.
    mean = (out.reshape(NQ, B, TQ, du)
               .transpose(0, 2, 1, 3)
               .reshape(Qp, B, du)[:Q])
    return mean


@partial(jax.jit, static_argnames=("tq",))
def policy_forward_batched(xs, ns, K, k_bias, log_sigma, *, tq=None):
    """Returns (mean, std), both (Q, B, du) — parameters of the Normal."""
    H = K.shape[0]
    ns = jnp.clip(jnp.asarray(ns, dtype=jnp.int32), 0, H - 1)
    mean = policy_conditional_mean_batched(xs, ns, K, k_bias, tq=tq)
    # std = exp(log_sigma[n]) is x-independent -> pure XLA, no kernel work.
    std = jnp.exp(jnp.take(log_sigma, ns, axis=0)).astype(mean.dtype)  # (Q,1,du)
    std = jnp.broadcast_to(std, mean.shape)
    return mean, std


# ----------------------------------------------------------------------------
# Single-query API (parity with PolicyWrapper.forward / .conditional_mean)
# ----------------------------------------------------------------------------
def policy_forward(x, n, K, k_bias, log_sigma):
    """PolicyWrapper.forward(x, n): returns (mean, std) of the Normal."""
    mean, std = policy_forward_batched(
        x[None], jnp.asarray([n], dtype=jnp.int32), K, k_bias, log_sigma)
    return mean[0], std[0]


def policy_conditional_mean(x, n, K, k_bias, log_sigma=None):
    """PolicyWrapper.conditional_mean(x, n): just the mean (no std work)."""
    del log_sigma  # unused; kept for API parity with forward
    mean = policy_conditional_mean_batched(
        x[None], jnp.asarray([n], dtype=jnp.int32), K, k_bias)
    return mean[0]


# ----------------------------------------------------------------------------
# Self-test
# ----------------------------------------------------------------------------
if __name__ == "__main__":
    B, dx, du, H = 4, 16, 8, 10
    Q = 6  # number of batched (x, n) queries

    key = jax.random.PRNGKey(0)
    kx, kK, kb, ks, kn = jax.random.split(key, 5)

    xs = jax.random.normal(kx, (Q, B, dx), dtype=jnp.float32)
    K = 0.1 * jax.random.normal(kK, (H, du, dx), dtype=jnp.float32)
    k_bias = 0.1 * jax.random.normal(kb, (H, 1, du), dtype=jnp.float32)
    log_sigma = 0.05 * jax.random.normal(ks, (H, 1, du), dtype=jnp.float32)
    ns = jax.random.randint(kn, (Q,), 0, H, dtype=jnp.int32)

    # ---- batched forward -------------------------------------------------
    mean_b, std_b = policy_forward_batched(xs, ns, K, k_bias, log_sigma)
    jax.block_until_ready((mean_b, std_b))

    ref_mean_b = jnp.einsum("qbd,qud->qbu", xs, K[ns]) + k_bias[ns]
    ref_std_b = jnp.broadcast_to(jnp.exp(log_sigma[ns]), ref_mean_b.shape)
    assert jnp.allclose(mean_b, ref_mean_b, atol=1e-5, rtol=1e-5)
    assert jnp.allclose(std_b, ref_std_b, atol=1e-5, rtol=1e-5)

    # ---- batched conditional_mean ----------------------------------------
    cm_b = policy_conditional_mean_batched(xs, ns, K, k_bias)
    jax.block_until_ready(cm_b)
    assert jnp.allclose(cm_b, ref_mean_b, atol=1e-5, rtol=1e-5)

    # ---- single-query API (torch-module parity) ---------------------------
    x0, n0 = xs[0], 3
    mean, std = policy_forward(x0, n0, K, k_bias, log_sigma)
    jax.block_until_ready((mean, std))
    ref_mean = x0 @ K[n0].T + k_bias[n0]
    ref_std = jnp.broadcast_to(jnp.exp(log_sigma[n0]), (B, du))
    assert jnp.allclose(mean, ref_mean, atol=1e-5, rtol=1e-5)
    assert jnp.allclose(std, ref_std, atol=1e-5, rtol=1e-5)

    cm = policy_conditional_mean(x0, n0, K, k_bias)
    jax.block_until_ready(cm)
    assert jnp.allclose(cm, ref_mean, atol=1e-5, rtol=1e-5)

    print("KERNEL_OK")
</pallas_src>

<mosaic_0001>
module attributes {stable_mosaic.version = 11 : i64} {
  func.func @_policy_mean_kernel(%arg0: i32, %arg1: memref<16x4x16xf32, #tpu.memory_space<vmem>>, %arg2: memref<16x8x16xf32, #tpu.memory_space<vmem>>, %arg3: memref<16x1x8xf32, #tpu.memory_space<vmem>>, %arg4: memref<1x4x128xf32, #tpu.memory_space<vmem>>) attributes {dimension_semantics = [#tpu.dimension_semantics<parallel>], iteration_bounds = array<i64: 1>, scalar_prefetch = 0 : i64, scratch_operands = 0 : i64, tpu.core_type = #tpu.core_type<tc>, window_params = [{transform_indices = @transform_0, window_bounds = array<i64: 16, 4, 16>}, {transform_indices = @transform_1, window_bounds = array<i64: 16, 8, 16>}, {transform_indices = @transform_2, window_bounds = array<i64: 16, 1, 8>}, {transform_indices = @transform_3, window_bounds = array<i64: 1, 4, 128>}]} {
    %c0 = arith.constant 0 : index
    %c0_0 = arith.constant 0 : index
    %c0_1 = arith.constant 0 : index
    %0 = vector.load %arg1[%c0, %c0_0, %c0_1] : memref<16x4x16xf32, #tpu.memory_space<vmem>>, vector<1x4x16xf32>
    %1 = vector.shape_cast %0 : vector<1x4x16xf32> to vector<4x16xf32>
    %c0_2 = arith.constant 0 : index
    %c0_3 = arith.constant 0 : index
    %c0_4 = arith.constant 0 : index
    %2 = vector.load %arg2[%c0_2, %c0_3, %c0_4] : memref<16x8x16xf32, #tpu.memory_space<vmem>>, vector<1x8x16xf32>
    %3 = vector.shape_cast %2 : vector<1x8x16xf32> to vector<8x16xf32>
    %cst = arith.constant dense<0.000000e+00> : vector<4x8xf32>
    %4 = tpu.matmul %1, %3, %cst {dimension_numbers = #tpu.dot_dimension_numbers<[1], [1], [0], [0], [0, 0, 1, 0], [], []>} : vector<4x16xf32>, vector<8x16xf32>, vector<4x8xf32> -> vector<4x8xf32>
    %c0_5 = arith.constant 0 : index
    %c0_6 = arith.constant 0 : index
    %c0_7 = arith.constant 0 : index
    %5 = vector.load %arg3[%c0_5, %c0_6, %c0_7] : memref<16x1x8xf32, #tpu.memory_space<vmem>>, vector<1x1x8xf32>
    %6 = vector.shape_cast %5 : vector<1x1x8xf32> to vector<1x8xf32>
    %7 = vector.broadcast %6 : vector<1x8xf32> to vector<4x8xf32>
    %8 = arith.addf %4, %7 : vector<4x8xf32>
    %c0_8 = arith.constant 0 : index
    %c0_9 = arith.constant 0 : index
    %c0_10 = arith.constant 0 : index
    %9 = vector.load %arg4[%c0_8, %c0_9, %c0_10] : memref<1x4x128xf32, #tpu.memory_space<vmem>>, vector<1x4x8xf32>
    %10 = vector.shape_cast %9 : vector<1x4x8xf32> to vector<4x8xf32>
    %11 = vector.shape_cast %8 : vector<4x8xf32> to vector<1x4x8xf32>
    tpu.vector_store %arg4[%c0_8, %c0_9, %c0_10], %11 {strides = array<i32>} : memref<1x4x128xf32, #tpu.memory_space<vmem>>, vector<1x4x8xf32>,
    %c1 = arith.constant 1 : index
    %c0_11 = arith.constant 0 : index
    %c0_12 = arith.constant 0 : index
    %12 = vector.load %arg1[%c1, %c0_11, %c0_12] : memref<16x4x16xf32, #tpu.memory_space<vmem>>, vector<1x4x16xf32>
    %13 = vector.shape_cast %12 : vector<1x4x16xf32> to vector<4x16xf32>
    %c1_13 = arith.constant 1 : index
    %c0_14 = arith.constant 0 : index
    %c0_15 = arith.constant 0 : index
    %14 = vector.load %arg2[%c1_13, %c0_14, %c0_15] : memref<16x8x16xf32, #tpu.memory_space<vmem>>, vector<1x8x16xf32>
    %15 = vector.shape_cast %14 : vector<1x8x16xf32> to vector<8x16xf32>
    %cst_16 = arith.constant dense<0.000000e+00> : vector<4x8xf32>
    %16 = tpu.matmul %13, %15, %cst_16 {dimension_numbers = #tpu.dot_dimension_numbers<[1], [1], [0], [0], [0, 0, 1, 0], [], []>} : vector<4x16xf32>, vector<8x16xf32>, vector<4x8xf32> -> vector<4x8xf32>
    %c1_17 = arith.constant 1 : index
    %c0_18 = arith.constant 0 : index
    %c0_19 = arith.constant 0 : index
    %17 = vector.load %arg3[%c1_17, %c0_18, %c0_19] : memref<16x1x8xf32, #tpu.memory_space<vmem>>, vector<1x1x8xf32>
    %18 = vector.shape_cast %17 : vector<1x1x8xf32> to vector<1x8xf32>
    %19 = vector.broadcast %18 : vector<1x8xf32> to vector<4x8xf32>
    %20 = arith.addf %16, %19 : vector<4x8xf32>
    %c0_20 = arith.constant 0 : index
    %c0_21 = arith.constant 0 : index
    %c8 = arith.constant 8 : index
    %21 = vector.load %arg4[%c0_20, %c0_21, %c8] : memref<1x4x128xf32, #tpu.memory_space<vmem>>, vector<1x4x8xf32>
    %22 = vector.shape_cast %21 : vector<1x4x8xf32> to vector<4x8xf32>
    %23 = vector.shape_cast %20 : vector<4x8xf32> to vector<1x4x8xf32>
    tpu.vector_store %arg4[%c0_20, %c0_21, %c8], %23 {strides = array<i32>} : memref<1x4x128xf32, #tpu.memory_space<vmem>>, vector<1x4x8xf32>,
    %c2 = arith.constant 2 : index
    %c0_22 = arith.constant 0 : index
    %c0_23 = arith.constant 0 : index
    %24 = vector.load %arg1[%c2, %c0_22, %c0_23] : memref<16x4x16xf32, #tpu.memory_space<vmem>>, vector<1x4x16xf32>
    %25 = vector.shape_cast %24 : vector<1x4x16xf32> to vector<4x16xf32>
    %c2_24 = arith.constant 2 : index
    %c0_25 = arith.constant 0 : index
    %c0_26 = arith.constant 0 : index
    %26 = vector.load %arg2[%c2_24, %c0_25, %c0_26] : memref<16x8x16xf32, #tpu.memory_space<vmem>>, vector<1x8x16xf32>
    %27 = vector.shape_cast %26 : vector<1x8x16xf32> to vector<8x16xf32>
    %cst_27 = arith.constant dense<0.000000e+00> : vector<4x8xf32>
    %28 = tpu.matmul %25, %27, %cst_27 {dimension_numbers = #tpu.dot_dimension_numbers<[1], [1], [0], [0], [0, 0, 1, 0], [], []>} : vector<4x16xf32>, vector<8x16xf32>, vector<4x8xf32> -> vector<4x8xf32>
    %c2_28 = arith.constant 2 : index
    %c0_29 = arith.constant 0 : index
    %c0_30 = arith.constant 0 : index
    %29 = vector.load %arg3[%c2_28, %c0_29, %c0_30] : memref<16x1x8xf32, #tpu.memory_space<vmem>>, vector<1x1x8xf32>
    %30 = vector.shape_cast %29 : vector<1x1x8xf32> to vector<1x8xf32>
    %31 = vector.broadcast %30 : vector<1x8xf32> to vector<4x8xf32>
    %32 = arith.addf %28, %31 : vector<4x8xf32>
    %c0_31 = arith.constant 0 : index
    %c0_32 = arith.constant 0 : index
    %c16 = arith.constant 16 : index
    %33 = vector.load %arg4[%c0_31, %c0_32, %c16] : memref<1x4x128xf32, #tpu.memory_space<vmem>>, vector<1x4x8xf32>
    %34 = vector.shape_cast %33 : vector<1x4x8xf32> to vector<4x8xf32>
    %35 = vector.shape_cast %32 : vector<4x8xf32> to vector<1x4x8xf32>
    tpu.vector_store %arg4[%c0_31, %c0_32, %c16], %35 {strides = array<i32>} : memref<1x4x128xf32, #tpu.memory_space<vmem>>, vector<1x4x8xf32>,
    %c3 = arith.constant 3 : index
    %c0_33 = arith.constant 0 : index
    %c0_34 = arith.constant 0 : index
    %36 = vector.load %arg1[%c3, %c0_33, %c0_34] : memref<16x4x16xf32, #tpu.memory_space<vmem>>, vector<1x4x16xf32>
    %37 = vector.shape_cast %36 : vector<1x4x16xf32> to vector<4x16xf32>
    %c3_35 = arith.constant 3 : index
    %c0_36 = arith.constant 0 : index
    %c0_37 = arith.constant 0 : index
    %38 = vector.load %arg2[%c3_35, %c0_36, %c0_37] : memref<16x8x16xf32, #tpu.memory_space<vmem>>, vector<1x8x16xf32>
    %39 = vector.shape_cast %38 : vector<1x8x16xf32> to vector<8x16xf32>
    %cst_38 = arith.constant dense<0.000000e+00> : vector<4x8xf32>
    %40 = tpu.matmul %37, %39, %cst_38 {dimension_numbers = #tpu.dot_dimension_numbers<[1], [1], [0], [0], [0, 0, 1, 0], [], []>} : vector<4x16xf32>, vector<8x16xf32>, vector<4x8xf32> -> vector<4x8xf32>
    %c3_39 = arith.constant 3 : index
    %c0_40 = arith.constant 0 : index
    %c0_41 = arith.constant 0 : index
    %41 = vector.load %arg3[%c3_39, %c0_40, %c0_41] : memref<16x1x8xf32, #tpu.memory_space<vmem>>, vector<1x1x8xf32>
    %42 = vector.shape_cast %41 : vector<1x1x8xf32> to vector<1x8xf32>
    %43 = vector.broadcast %42 : vector<1x8xf32> to vector<4x8xf32>
    %44 = arith.addf %40, %43 : vector<4x8xf32>
    %c0_42 = arith.constant 0 : index
    %c0_43 = arith.constant 0 : index
    %c24 = arith.constant 24 : index
    %45 = vector.load %arg4[%c0_42, %c0_43, %c24] : memref<1x4x128xf32, #tpu.memory_space<vmem>>, vector<1x4x8xf32>
    %46 = vector.shape_cast %45 : vector<1x4x8xf32> to vector<4x8xf32>
    %47 = vector.shape_cast %44 : vector<4x8xf32> to vector<1x4x8xf32>
    tpu.vector_store %arg4[%c0_42, %c0_43, %c24], %47 {strides = array<i32>} : memref<1x4x128xf32, #tpu.memory_space<vmem>>, vector<1x4x8xf32>,
    %c4 = arith.constant 4 : index
    %c0_44 = arith.constant 0 : index
    %c0_45 = arith.constant 0 : index
    %48 = vector.load %arg1[%c4, %c0_44, %c0_45] : memref<16x4x16xf32, #tpu.memory_space<vmem>>, vector<1x4x16xf32>
    %49 = vector.shape_cast %48 : vector<1x4x16xf32> to vector<4x16xf32>
    %c4_46 = arith.constant 4 : index
    %c0_47 = arith.constant 0 : index
    %c0_48 = arith.constant 0 : index
    %50 = vector.load %arg2[%c4_46, %c0_47, %c0_48] : memref<16x8x16xf32, #tpu.memory_space<vmem>>, vector<1x8x16xf32>
    %51 = vector.shape_cast %50 : vector<1x8x16xf32> to vector<8x16xf32>
    %cst_49 = arith.constant dense<0.000000e+00> : vector<4x8xf32>
    %52 = tpu.matmul %49, %51, %cst_49 {dimension_numbers = #tpu.dot_dimension_numbers<[1], [1], [0], [0], [0, 0, 1, 0], [], []>} : vector<4x16xf32>, vector<8x16xf32>, vector<4x8xf32> -> vector<4x8xf32>
    %c4_50 = arith.constant 4 : index
    %c0_51 = arith.constant 0 : index
    %c0_52 = arith.constant 0 : index
    %53 = vector.load %arg3[%c4_50, %c0_51, %c0_52] : memref<16x1x8xf32, #tpu.memory_space<vmem>>, vector<1x1x8xf32>
    %54 = vector.shape_cast %53 : vector<1x1x8xf32> to vector<1x8xf32>
    %55 = vector.broadcast %54 : vector<1x8xf32> to vector<4x8xf32>
    %56 = arith.addf %52, %55 : vector<4x8xf32>
    %c0_53 = arith.constant 0 : index
    %c0_54 = arith.constant 0 : index
    %c32 = arith.constant 32 : index
    %57 = vector.load %arg4[%c0_53, %c0_54, %c32] : memref<1x4x128xf32, #tpu.memory_space<vmem>>, vector<1x4x8xf32>
    %58 = vector.shape_cast %57 : vector<1x4x8xf32> to vector<4x8xf32>
    %59 = vector.shape_cast %56 : vector<4x8xf32> to vector<1x4x8xf32>
    tpu.vector_store %arg4[%c0_53, %c0_54, %c32], %59 {strides = array<i32>} : memref<1x4x128xf32, #tpu.memory_space<vmem>>, vector<1x4x8xf32>,
    %c5 = arith.constant 5 : index
    %c0_55 = arith.constant 0 : index
    %c0_56 = arith.constant 0 : index
    %60 = vector.load %arg1[%c5, %c0_55, %c0_56] : memref<16x4x16xf32, #tpu.memory_space<vmem>>, vector<1x4x16xf32>
    %61 = vector.shape_cast %60 : vector<1x4x16xf32> to vector<4x16xf32>
    %c5_57 = arith.constant 5 : index
    %c0_58 = arith.constant 0 : index
    %c0_59 = arith.constant 0 : index
    %62 = vector.load %arg2[%c5_57, %c0_58, %c0_59] : memref<16x8x16xf32, #tpu.memory_space<vmem>>, vector<1x8x16xf32>
    %63 = vector.shape_cast %62 : vector<1x8x16xf32> to vector<8x16xf32>
    %cst_60 = arith.constant dense<0.000000e+00> : vector<4x8xf32>
    %64 = tpu.matmul %61, %63, %cst_60 {dimension_numbers = #tpu.dot_dimension_numbers<[1], [1], [0], [0], [0, 0, 1, 0], [], []>} : vector<4x16xf32>, vector<8x16xf32>, vector<4x8xf32> -> vector<4x8xf32>
    %c5_61 = arith.constant 5 : index
    %c0_62 = arith.constant 0 : index
    %c0_63 = arith.constant 0 : index
    %65 = vector.load %arg3[%c5_61, %c0_62, %c0_63] : memref<16x1x8xf32, #tpu.memory_space<vmem>>, vector<1x1x8xf32>
    %66 = vector.shape_cast %65 : vector<1x1x8xf32> to vector<1x8xf32>
    %67 = vector.broadcast %66 : vector<1x8xf32> to vector<4x8xf32>
    %68 = arith.addf %64, %67 : vector<4x8xf32>
    %c0_64 = arith.constant 0 : index
    %c0_65 = arith.constant 0 : index
    %c40 = arith.constant 40 : index
    %69 = vector.load %arg4[%c0_64, %c0_65, %c40] : memref<1x4x128xf32, #tpu.memory_space<vmem>>, vector<1x4x8xf32>
    %70 = vector.shape_cast %69 : vector<1x4x8xf32> to vector<4x8xf32>
    %71 = vector.shape_cast %68 : vector<4x8xf32> to vector<1x4x8xf32>
    tpu.vector_store %arg4[%c0_64, %c0_65, %c40], %71 {strides = array<i32>} : memref<1x4x128xf32, #tpu.memory_space<vmem>>, vector<1x4x8xf32>,
    %c6 = arith.constant 6 : index
    %c0_66 = arith.constant 0 : index
    %c0_67 = arith.constant 0 : index
    %72 = vector.load %arg1[%c6, %c0_66, %c0_67] : memref<16x4x16xf32, #tpu.memory_space<vmem>>, vector<1x4x16xf32>
    %73 = vector.shape_cast %72 : vector<1x4x16xf32> to vector<4x16xf32>
    %c6_68 = arith.constant 6 : index
    %c0_69 = arith.constant 0 : index
    %c0_70 = arith.constant 0 : index
    %74 = vector.load %arg2[%c6_68, %c0_69, %c0_70] : memref<16x8x16xf32, #tpu.memory_space<vmem>>, vector<1x8x16xf32>
    %75 = vector.shape_cast %74 : vector<1x8x16xf32> to vector<8x16xf32>
    %cst_71 = arith.constant dense<0.000000e+00> : vector<4x8xf32>
    %76 = tpu.matmul %73, %75, %cst_71 {dimension_numbers = #tpu.dot_dimension_numbers<[1], [1], [0], [0], [0, 0, 1, 0], [], []>} : vector<4x16xf32>, vector<8x16xf32>, vector<4x8xf32> -> vector<4x8xf32>
    %c6_72 = arith.constant 6 : index
    %c0_73 = arith.constant 0 : index
    %c0_74 = arith.constant 0 : index
    %77 = vector.load %arg3[%c6_72, %c0_73, %c0_74] : memref<16x1x8xf32, #tpu.memory_space<vmem>>, vector<1x1x8xf32>
    %78 = vector.shape_cast %77 : vector<1x1x8xf32> to vector<1x8xf32>
    %79 = vector.broadcast %78 : vector<1x8xf32> to vector<4x8xf32>
    %80 = arith.addf %76, %79 : vector<4x8xf32>
    %c0_75 = arith.constant 0 : index
    %c0_76 = arith.constant 0 : index
    %c48 = arith.constant 48 : index
    %81 = vector.load %arg4[%c0_75, %c0_76, %c48] : memref<1x4x128xf32, #tpu.memory_space<vmem>>, vector<1x4x8xf32>
    %82 = vector.shape_cast %81 : vector<1x4x8xf32> to vector<4x8xf32>
    %83 = vector.shape_cast %80 : vector<4x8xf32> to vector<1x4x8xf32>
    tpu.vector_store %arg4[%c0_75, %c0_76, %c48], %83 {strides = array<i32>} : memref<1x4x128xf32, #tpu.memory_space<vmem>>, vector<1x4x8xf32>,
    %c7 = arith.constant 7 : index
    %c0_77 = arith.constant 0 : index
    %c0_78 = arith.constant 0 : index
    %84 = vector.load %arg1[%c7, %c0_77, %c0_78] : memref<16x4x16xf32, #tpu.memory_space<vmem>>, vector<1x4x16xf32>
    %85 = vector.shape_cast %84 : vector<1x4x16xf32> to vector<4x16xf32>
    %c7_79 = arith.constant 7 : index
    %c0_80 = arith.constant 0 : index
    %c0_81 = arith.constant 0 : index
    %86 = vector.load %arg2[%c7_79, %c0_80, %c0_81] : memref<16x8x16xf32, #tpu.memory_space<vmem>>, vector<1x8x16xf32>
    %87 = vector.shape_cast %86 : vector<1x8x16xf32> to vector<8x16xf32>
    %cst_82 = arith.constant dense<0.000000e+00> : vector<4x8xf32>
    %88 = tpu.matmul %85, %87, %cst_82 {dimension_numbers = #tpu.dot_dimension_numbers<[1], [1], [0], [0], [0, 0, 1, 0], [], []>} : vector<4x16xf32>, vector<8x16xf32>, vector<4x8xf32> -> vector<4x8xf32>
    %c7_83 = arith.constant 7 : index
    %c0_84 = arith.constant 0 : index
    %c0_85 = arith.constant 0 : index
    %89 = vector.load %arg3[%c7_83, %c0_84, %c0_85] : memref<16x1x8xf32, #tpu.memory_space<vmem>>, vector<1x1x8xf32>
    %90 = vector.shape_cast %89 : vector<1x1x8xf32> to vector<1x8xf32>
    %91 = vector.broadcast %90 : vector<1x8xf32> to vector<4x8xf32>
    %92 = arith.addf %88, %91 : vector<4x8xf32>
    %c0_86 = arith.constant 0 : index
    %c0_87 = arith.constant 0 : index
    %c56 = arith.constant 56 : index
    %93 = vector.load %arg4[%c0_86, %c0_87, %c56] : memref<1x4x128xf32, #tpu.memory_space<vmem>>, vector<1x4x8xf32>
    %94 = vector.shape_cast %93 : vector<1x4x8xf32> to vector<4x8xf32>
    %95 = vector.shape_cast %92 : vector<4x8xf32> to vector<1x4x8xf32>
    tpu.vector_store %arg4[%c0_86, %c0_87, %c56], %95 {strides = array<i32>} : memref<1x4x128xf32, #tpu.memory_space<vmem>>, vector<1x4x8xf32>,
    %c8_88 = arith.constant 8 : index
    %c0_89 = arith.constant 0 : index
    %c0_90 = arith.constant 0 : index
    %96 = vector.load %arg1[%c8_88, %c0_89, %c0_90] : memref<16x4x16xf32, #tpu.memory_space<vmem>>, vector<1x4x16xf32>
    %97 = vector.shape_cast %96 : vector<1x4x16xf32> to vector<4x16xf32>
    %c8_91 = arith.constant 8 : index
    %c0_92 = arith.constant 0 : index
    %c0_93 = arith.constant 0 : index
    %98 = vector.load %arg2[%c8_91, %c0_92, %c0_93] : memref<16x8x16xf32, #tpu.memory_space<vmem>>, vector<1x8x16xf32>
    %99 = vector.shape_cast %98 : vector<1x8x16xf32> to vector<8x16xf32>
    %cst_94 = arith.constant dense<0.000000e+00> : vector<4x8xf32>
    %100 = tpu.matmul %97, %99, %cst_94 {dimension_numbers = #tpu.dot_dimension_numbers<[1], [1], [0], [0], [0, 0, 1, 0], [], []>} : vector<4x16xf32>, vector<8x16xf32>, vector<4x8xf32> -> vector<4x8xf32>
    %c8_95 = arith.constant 8 : index
    %c0_96 = arith.constant 0 : index
    %c0_97 = arith.constant 0 : index
    %101 = vector.load %arg3[%c8_95, %c0_96, %c0_97] : memref<16x1x8xf32, #tpu.memory_space<vmem>>, vector<1x1x8xf32>
    %102 = vector.shape_cast %101 : vector<1x1x8xf32> to vector<1x8xf32>
    %103 = vector.broadcast %102 : vector<1x8xf32> to vector<4x8xf32>
    %104 = arith.addf %100, %103 : vector<4x8xf32>
    %c0_98 = arith.constant 0 : index
    %c0_99 = arith.constant 0 : index
    %c64 = arith.constant 64 : index
    %105 = vector.load %arg4[%c0_98, %c0_99, %c64] : memref<1x4x128xf32, #tpu.memory_space<vmem>>, vector<1x4x8xf32>
    %106 = vector.shape_cast %105 : vector<1x4x8xf32> to vector<4x8xf32>
    %107 = vector.shape_cast %104 : vector<4x8xf32> to vector<1x4x8xf32>
    tpu.vector_store %arg4[%c0_98, %c0_99, %c64], %107 {strides = array<i32>} : memref<1x4x128xf32, #tpu.memory_space<vmem>>, vector<1x4x8xf32>,
    %c9 = arith.constant 9 : index
    %c0_100 = arith.constant 0 : index
    %c0_101 = arith.constant 0 : index
    %108 = vector.load %arg1[%c9, %c0_100, %c0_101] : memref<16x4x16xf32, #tpu.memory_space<vmem>>, vector<1x4x16xf32>
    %109 = vector.shape_cast %108 : vector<1x4x16xf32> to vector<4x16xf32>
    %c9_102 = arith.constant 9 : index
    %c0_103 = arith.constant 0 : index
    %c0_104 = arith.constant 0 : index
    %110 = vector.load %arg2[%c9_102, %c0_103, %c0_104] : memref<16x8x16xf32, #tpu.memory_space<vmem>>, vector<1x8x16xf32>
    %111 = vector.shape_cast %110 : vector<1x8x16xf32> to vector<8x16xf32>
    %cst_105 = arith.constant dense<0.000000e+00> : vector<4x8xf32>
    %112 = tpu.matmul %109, %111, %cst_105 {dimension_numbers = #tpu.dot_dimension_numbers<[1], [1], [0], [0], [0, 0, 1, 0], [], []>} : vector<4x16xf32>, vector<8x16xf32>, vector<4x8xf32> -> vector<4x8xf32>
    %c9_106 = arith.constant 9 : index
    %c0_107 = arith.constant 0 : index
    %c0_108 = arith.constant 0 : index
    %113 = vector.load %arg3[%c9_106, %c0_107, %c0_108] : memref<16x1x8xf32, #tpu.memory_space<vmem>>, vector<1x1x8xf32>
    %114 = vector.shape_cast %113 : vector<1x1x8xf32> to vector<1x8xf32>
    %115 = vector.broadcast %114 : vector<1x8xf32> to vector<4x8xf32>
    %116 = arith.addf %112, %115 : vector<4x8xf32>
    %c0_109 = arith.constant 0 : index
    %c0_110 = arith.constant 0 : index
    %c72 = arith.constant 72 : index
    %117 = vector.load %arg4[%c0_109, %c0_110, %c72] : memref<1x4x128xf32, #tpu.memory_space<vmem>>, vector<1x4x8xf32>
    %118 = vector.shape_cast %117 : vector<1x4x8xf32> to vector<4x8xf32>
    %119 = vector.shape_cast %116 : vector<4x8xf32> to vector<1x4x8xf32>
    tpu.vector_store %arg4[%c0_109, %c0_110, %c72], %119 {strides = array<i32>} : memref<1x4x128xf32, #tpu.memory_space<vmem>>, vector<1x4x8xf32>,
    %c10 = arith.constant 10 : index
    %c0_111 = arith.constant 0 : index
    %c0_112 = arith.constant 0 : index
    %120 = vector.load %arg1[%c10, %c0_111, %c0_112] : memref<16x4x16xf32, #tpu.memory_space<vmem>>, vector<1x4x16xf32>
    %121 = vector.shape_cast %120 : vector<1x4x16xf32> to vector<4x16xf32>
    %c10_113 = arith.constant 10 : index
    %c0_114 = arith.constant 0 : index
    %c0_115 = arith.constant 0 : index
    %122 = vector.load %arg2[%c10_113, %c0_114, %c0_115] : memref<16x8x16xf32, #tpu.memory_space<vmem>>, vector<1x8x16xf32>
    %123 = vector.shape_cast %122 : vector<1x8x16xf32> to vector<8x16xf32>
    %cst_116 = arith.constant dense<0.000000e+00> : vector<4x8xf32>
    %124 = tpu.matmul %121, %123, %cst_116 {dimension_numbers = #tpu.dot_dimension_numbers<[1], [1], [0], [0], [0, 0, 1, 0], [], []>} : vector<4x16xf32>, vector<8x16xf32>, vector<4x8xf32> -> vector<4x8xf32>
    %c10_117 = arith.constant 10 : index
    %c0_118 = arith.constant 0 : index
    %c0_119 = arith.constant 0 : index
    %125 = vector.load %arg3[%c10_117, %c0_118, %c0_119] : memref<16x1x8xf32, #tpu.memory_space<vmem>>, vector<1x1x8xf32>
    %126 = vector.shape_cast %125 : vector<1x1x8xf32> to vector<1x8xf32>
    %127 = vector.broadcast %126 : vector<1x8xf32> to vector<4x8xf32>
    %128 = arith.addf %124, %127 : vector<4x8xf32>
    %c0_120 = arith.constant 0 : index
    %c0_121 = arith.constant 0 : index
    %c80 = arith.constant 80 : index
    %129 = vector.load %arg4[%c0_120, %c0_121, %c80] : memref<1x4x128xf32, #tpu.memory_space<vmem>>, vector<1x4x8xf32>
    %130 = vector.shape_cast %129 : vector<1x4x8xf32> to vector<4x8xf32>
    %131 = vector.shape_cast %128 : vector<4x8xf32> to vector<1x4x8xf32>
    tpu.vector_store %arg4[%c0_120, %c0_121, %c80], %131 {strides = array<i32>} : memref<1x4x128xf32, #tpu.memory_space<vmem>>, vector<1x4x8xf32>,
    %c11 = arith.constant 11 : index
    %c0_122 = arith.constant 0 : index
    %c0_123 = arith.constant 0 : index
    %132 = vector.load %arg1[%c11, %c0_122, %c0_123] : memref<16x4x16xf32, #tpu.memory_space<vmem>>, vector<1x4x16xf32>
    %133 = vector.shape_cast %132 : vector<1x4x16xf32> to vector<4x16xf32>
    %c11_124 = arith.constant 11 : index
    %c0_125 = arith.constant 0 : index
    %c0_126 = arith.constant 0 : index
    %134 = vector.load %arg2[%c11_124, %c0_125, %c0_126] : memref<16x8x16xf32, #tpu.memory_space<vmem>>, vector<1x8x16xf32>
    %135 = vector.shape_cast %134 : vector<1x8x16xf32> to vector<8x16xf32>
    %cst_127 = arith.constant dense<0.000000e+00> : vector<4x8xf32>
    %136 = tpu.matmul %133, %135, %cst_127 {dimension_numbers = #tpu.dot_dimension_numbers<[1], [1], [0], [0], [0, 0, 1, 0], [], []>} : vector<4x16xf32>, vector<8x16xf32>, vector<4x8xf32> -> vector<4x8xf32>
    %c11_128 = arith.constant 11 : index
    %c0_129 = arith.constant 0 : index
    %c0_130 = arith.constant 0 : index
    %137 = vector.load %arg3[%c11_128, %c0_129, %c0_130] : memref<16x1x8xf32, #tpu.memory_space<vmem>>, vector<1x1x8xf32>
    %138 = vector.shape_cast %137 : vector<1x1x8xf32> to vector<1x8xf32>
    %139 = vector.broadcast %138 : vector<1x8xf32> to vector<4x8xf32>
    %140 = arith.addf %136, %139 : vector<4x8xf32>
    %c0_131 = arith.constant 0 : index
    %c0_132 = arith.constant 0 : index
    %c88 = arith.constant 88 : index
    %141 = vector.load %arg4[%c0_131, %c0_132, %c88] : memref<1x4x128xf32, #tpu.memory_space<vmem>>, vector<1x4x8xf32>
    %142 = vector.shape_cast %141 : vector<1x4x8xf32> to vector<4x8xf32>
    %143 = vector.shape_cast %140 : vector<4x8xf32> to vector<1x4x8xf32>
    tpu.vector_store %arg4[%c0_131, %c0_132, %c88], %143 {strides = array<i32>} : memref<1x4x128xf32, #tpu.memory_space<vmem>>, vector<1x4x8xf32>,
    %c12 = arith.constant 12 : index
    %c0_133 = arith.constant 0 : index
    %c0_134 = arith.constant 0 : index
    %144 = vector.load %arg1[%c12, %c0_133, %c0_134] : memref<16x4x16xf32, #tpu.memory_space<vmem>>, vector<1x4x16xf32>
    %145 = vector.shape_cast %144 : vector<1x4x16xf32> to vector<4x16xf32>
    %c12_135 = arith.constant 12 : index
    %c0_136 = arith.constant 0 : index
    %c0_137 = arith.constant 0 : index
    %146 = vector.load %arg2[%c12_135, %c0_136, %c0_137] : memref<16x8x16xf32, #tpu.memory_space<vmem>>, vector<1x8x16xf32>
    %147 = vector.shape_cast %146 : vector<1x8x16xf32> to vector<8x16xf32>
    %cst_138 = arith.constant dense<0.000000e+00> : vector<4x8xf32>
    %148 = tpu.matmul %145, %147, %cst_138 {dimension_numbers = #tpu.dot_dimension_numbers<[1], [1], [0], [0], [0, 0, 1, 0], [], []>} : vector<4x16xf32>, vector<8x16xf32>, vector<4x8xf32> -> vector<4x8xf32>
    %c12_139 = arith.constant 12 : index
    %c0_140 = arith.constant 0 : index
    %c0_141 = arith.constant 0 : index
    %149 = vector.load %arg3[%c12_139, %c0_140, %c0_141] : memref<16x1x8xf32, #tpu.memory_space<vmem>>, vector<1x1x8xf32>
    %150 = vector.shape_cast %149 : vector<1x1x8xf32> to vector<1x8xf32>
    %151 = vector.broadcast %150 : vector<1x8xf32> to vector<4x8xf32>
    %152 = arith.addf %148, %151 : vector<4x8xf32>
    %c0_142 = arith.constant 0 : index
    %c0_143 = arith.constant 0 : index
    %c96 = arith.constant 96 : index
    %153 = vector.load %arg4[%c0_142, %c0_143, %c96] : memref<1x4x128xf32, #tpu.memory_space<vmem>>, vector<1x4x8xf32>
    %154 = vector.shape_cast %153 : vector<1x4x8xf32> to vector<4x8xf32>
    %155 = vector.shape_cast %152 : vector<4x8xf32> to vector<1x4x8xf32>
    tpu.vector_store %arg4[%c0_142, %c0_143, %c96], %155 {strides = array<i32>} : memref<1x4x128xf32, #tpu.memory_space<vmem>>, vector<1x4x8xf32>,
    %c13 = arith.constant 13 : index
    %c0_144 = arith.constant 0 : index
    %c0_145 = arith.constant 0 : index
    %156 = vector.load %arg1[%c13, %c0_144, %c0_145] : memref<16x4x16xf32, #tpu.memory_space<vmem>>, vector<1x4x16xf32>
    %157 = vector.shape_cast %156 : vector<1x4x16xf32> to vector<4x16xf32>
    %c13_146 = arith.constant 13 : index
    %c0_147 = arith.constant 0 : index
    %c0_148 = arith.constant 0 : index
    %158 = vector.load %arg2[%c13_146, %c0_147, %c0_148] : memref<16x8x16xf32, #tpu.memory_space<vmem>>, vector<1x8x16xf32>
    %159 = vector.shape_cast %158 : vector<1x8x16xf32> to vector<8x16xf32>
    %cst_149 = arith.constant dense<0.000000e+00> : vector<4x8xf32>
    %160 = tpu.matmul %157, %159, %cst_149 {dimension_numbers = #tpu.dot_dimension_numbers<[1], [1], [0], [0], [0, 0, 1, 0], [], []>} : vector<4x16xf32>, vector<8x16xf32>, vector<4x8xf32> -> vector<4x8xf32>
    %c13_150 = arith.constant 13 : index
    %c0_151 = arith.constant 0 : index
    %c0_152 = arith.constant 0 : index
    %161 = vector.load %arg3[%c13_150, %c0_151, %c0_152] : memref<16x1x8xf32, #tpu.memory_space<vmem>>, vector<1x1x8xf32>
    %162 = vector.shape_cast %161 : vector<1x1x8xf32> to vector<1x8xf32>
    %163 = vector.broadcast %162 : vector<1x8xf32> to vector<4x8xf32>
    %164 = arith.addf %160, %163 : vector<4x8xf32>
    %c0_153 = arith.constant 0 : index
    %c0_154 = arith.constant 0 : index
    %c104 = arith.constant 104 : index
    %165 = vector.load %arg4[%c0_153, %c0_154, %c104] : memref<1x4x128xf32, #tpu.memory_space<vmem>>, vector<1x4x8xf32>
    %166 = vector.shape_cast %165 : vector<1x4x8xf32> to vector<4x8xf32>
    %167 = vector.shape_cast %164 : vector<4x8xf32> to vector<1x4x8xf32>
    tpu.vector_store %arg4[%c0_153, %c0_154, %c104], %167 {strides = array<i32>} : memref<1x4x128xf32, #tpu.memory_space<vmem>>, vector<1x4x8xf32>,
    %c14 = arith.constant 14 : index
    %c0_155 = arith.constant 0 : index
    %c0_156 = arith.constant 0 : index
    %168 = vector.load %arg1[%c14, %c0_155, %c0_156] : memref<16x4x16xf32, #tpu.memory_space<vmem>>, vector<1x4x16xf32>
    %169 = vector.shape_cast %168 : vector<1x4x16xf32> to vector<4x16xf32>
    %c14_157 = arith.constant 14 : index
    %c0_158 = arith.constant 0 : index
    %c0_159 = arith.constant 0 : index
    %170 = vector.load %arg2[%c14_157, %c0_158, %c0_159] : memref<16x8x16xf32, #tpu.memory_space<vmem>>, vector<1x8x16xf32>
    %171 = vector.shape_cast %170 : vector<1x8x16xf32> to vector<8x16xf32>
    %cst_160 = arith.constant dense<0.000000e+00> : vector<4x8xf32>
    %172 = tpu.matmul %169, %171, %cst_160 {dimension_numbers = #tpu.dot_dimension_numbers<[1], [1], [0], [0], [0, 0, 1, 0], [], []>} : vector<4x16xf32>, vector<8x16xf32>, vector<4x8xf32> -> vector<4x8xf32>
    %c14_161 = arith.constant 14 : index
    %c0_162 = arith.constant 0 : index
    %c0_163 = arith.constant 0 : index
    %173 = vector.load %arg3[%c14_161, %c0_162, %c0_163] : memref<16x1x8xf32, #tpu.memory_space<vmem>>, vector<1x1x8xf32>
    %174 = vector.shape_cast %173 : vector<1x1x8xf32> to vector<1x8xf32>
    %175 = vector.broadcast %174 : vector<1x8xf32> to vector<4x8xf32>
    %176 = arith.addf %172, %175 : vector<4x8xf32>
    %c0_164 = arith.constant 0 : index
    %c0_165 = arith.constant 0 : index
    %c112 = arith.constant 112 : index
    %177 = vector.load %arg4[%c0_164, %c0_165, %c112] : memref<1x4x128xf32, #tpu.memory_space<vmem>>, vector<1x4x8xf32>
    %178 = vector.shape_cast %177 : vector<1x4x8xf32> to vector<4x8xf32>
    %179 = vector.shape_cast %176 : vector<4x8xf32> to vector<1x4x8xf32>
    tpu.vector_store %arg4[%c0_164, %c0_165, %c112], %179 {strides = array<i32>} : memref<1x4x128xf32, #tpu.memory_space<vmem>>, vector<1x4x8xf32>,
    %c15 = arith.constant 15 : index
    %c0_166 = arith.constant 0 : index
    %c0_167 = arith.constant 0 : index
    %180 = vector.load %arg1[%c15, %c0_166, %c0_167] : memref<16x4x16xf32, #tpu.memory_space<vmem>>, vector<1x4x16xf32>
    %181 = vector.shape_cast %180 : vector<1x4x16xf32> to vector<4x16xf32>
    %c15_168 = arith.constant 15 : index
    %c0_169 = arith.constant 0 : index
    %c0_170 = arith.constant 0 : index
    %182 = vector.load %arg2[%c15_168, %c0_169, %c0_170] : memref<16x8x16xf32, #tpu.memory_space<vmem>>, vector<1x8x16xf32>
    %183 = vector.shape_cast %182 : vector<1x8x16xf32> to vector<8x16xf32>
    %cst_171 = arith.constant dense<0.000000e+00> : vector<4x8xf32>
    %184 = tpu.matmul %181, %183, %cst_171 {dimension_numbers = #tpu.dot_dimension_numbers<[1], [1], [0], [0], [0, 0, 1, 0], [], []>} : vector<4x16xf32>, vector<8x16xf32>, vector<4x8xf32> -> vector<4x8xf32>
    %c15_172 = arith.constant 15 : index
    %c0_173 = arith.constant 0 : index
    %c0_174 = arith.constant 0 : index
    %185 = vector.load %arg3[%c15_172, %c0_173, %c0_174] : memref<16x1x8xf32, #tpu.memory_space<vmem>>, vector<1x1x8xf32>
    %186 = vector.shape_cast %185 : vector<1x1x8xf32> to vector<1x8xf32>
    %187 = vector.broadcast %186 : vector<1x8xf32> to vector<4x8xf32>
    %188 = arith.addf %184, %187 : vector<4x8xf32>
    %c0_175 = arith.constant 0 : index
    %c0_176 = arith.constant 0 : index
    %c120 = arith.constant 120 : index
    %189 = vector.load %arg4[%c0_175, %c0_176, %c120] : memref<1x4x128xf32, #tpu.memory_space<vmem>>, vector<1x4x8xf32>
    %190 = vector.shape_cast %189 : vector<1x4x8xf32> to vector<4x8xf32>
    %191 = vector.shape_cast %188 : vector<4x8xf32> to vector<1x4x8xf32>
    tpu.vector_store %arg4[%c0_175, %c0_176, %c120], %191 {strides = array<i32>} : memref<1x4x128xf32, #tpu.memory_space<vmem>>, vector<1x4x8xf32>,
    return
  }
  func.func @transform_0(%arg0: i32) -> (i32, i32, i32) {
    %c0_i32 = arith.constant 0 : i32
    %c0_i32_0 = arith.constant 0 : i32
    %c0_i32_1 = arith.constant 0 : i32
    return %arg0, %c0_i32, %c0_i32_0 : i32, i32, i32
  }
  func.func @transform_1(%arg0: i32) -> (i32, i32, i32) {
    %c0_i32 = arith.constant 0 : i32
    %c0_i32_0 = arith.constant 0 : i32
    %c0_i32_1 = arith.constant 0 : i32
    return %arg0, %c0_i32, %c0_i32_0 : i32, i32, i32
  }
  func.func @transform_2(%arg0: i32) -> (i32, i32, i32) {
    %c0_i32 = arith.constant 0 : i32
    %c0_i32_0 = arith.constant 0 : i32
    %c0_i32_1 = arith.constant 0 : i32
    return %arg0, %c0_i32, %c0_i32_0 : i32, i32, i32
  }
  func.func @transform_3(%arg0: i32) -> (i32, i32, i32) {
    %c0_i32 = arith.constant 0 : i32
    %c0_i32_0 = arith.constant 0 : i32
    %c0_i32_1 = arith.constant 0 : i32
    return %arg0, %c0_i32, %c0_i32_0 : i32, i32, i32
  }
}

</mosaic_0001>

<llo_original>
// kernel: policy_conditional_mean_batched.1
$region0: #{policy_conditional_mean_batched.1}
  #allocation0 [shape = 'u32[]', space=smem, size = 0x4, offset = 0x4, fixed_abs, tag = 'smem constant byte address 0x4 - core index']
  #allocation1 [shape = 'u32[144,128]{1,0:T(1,128)}', space=vmem, size = 0x12000, scoped, tag = 'internal scratch']
  %s0 = inlined_call_operand.vmem [shape: f32[16,4,16], index: 0, kind: input, shape index: {}]
  %s1 = inlined_call_operand.vmem [shape: f32[16,8,16], index: 1, kind: input, shape index: {}]
  %s2 = inlined_call_operand.vmem [shape: f32[16,1,8], index: 2, kind: input, shape index: {}]
  %s3 = inlined_call_operand.vmem [shape: f32[1,4,128], index: 3, kind: output, shape index: {}]
  %s4 = sld [smem:[#allocation0]]
  $region22: #{policy_conditional_mean_batched.1} parent=0
    _
  %s6 = ssub.s32 1, %s4
  %s7 = scalar_select 0, %s6, %s4
  // Predicated region
  $region2: #{policy_conditional_mean_batched.1} parent=0 // pred_check
    _
  $region3: #{policy_conditional_mean_batched.1} parent=0 // pred_check_branch
    %9 = sbr.rel (0) target = $region5
  $region4: #{policy_conditional_mean_batched.1} parent=0 // pred_region
    _
  $region5: #{policy_conditional_mean_batched.1} parent=0 // pred_fallthru
    _
  // Predicated region
  $region6: #{policy_conditional_mean_batched.1} parent=0 // pred_check
    _
  $region7: #{policy_conditional_mean_batched.1} parent=0 // pred_check_branch
    %11 = sbr.rel (0) target = $region9
  $region8: #{policy_conditional_mean_batched.1} parent=0 // pred_region
    _
  $region9: #{policy_conditional_mean_batched.1} parent=0 // pred_fallthru
    _
  // Predicated region
  $region10: #{policy_conditional_mean_batched.1} parent=0 // pred_check
    _
  $region11: #{policy_conditional_mean_batched.1} parent=0 // pred_check_branch
    %13 = sbr.rel (0) target = $region13
  $region12: #{policy_conditional_mean_batched.1} parent=0 // pred_region
    _
  $region13: #{policy_conditional_mean_batched.1} parent=0 // pred_fallthru
    _
  %v14 = vld [vmem:[%s0] sm:$0xf]
  %v15 = vld [vmem:[%s1] sm:$0xff]
  %v16 = vld [vmem:[%s2] sm:$0x1]
  %v18 = vlaneseq
  %v19 = vshrl.u32 %v18, 7
  %v20 = vsub.s32 0, %v19
  %v21 = vrot.slane %v16, %v20
  %vm23 = vcmask 130048
  %v25 = vsel %vm23, %v14, 0
  %v28 = vsel %vm23, %v15, 0
  %30 = vmatprep.subr.mxu0 0.0
  %31 = vmatpush1.xpose.msra.mxu0 %v28
  %32 = vmatprep.subr.mxu0 0.0
  %33 = vmatpush1.xpose.msra.mxu0 0.0
  %34 = vmatprep.subr.mxu0 0.0
  %35 = vmatpush1.xpose.msra.mxu0 0.0
  %36 = vmatprep.subr.mxu0 0.0
  %37 = vmatpush1.xpose.msra.mxu0 0.0
  %38 = vmatprep.subr.mxu0 0.0
  %39 = vmatpush1.xpose.msra.mxu0 0.0
  %40 = vmatprep.subr.mxu0 0.0
  %41 = vmatpush1.xpose.msra.mxu0 0.0
  %42 = vmatprep.subr.mxu0 0.0
  %43 = vmatpush1.xpose.msra.mxu0 0.0
  %44 = vmatprep.subr.mxu0 0.0
  %45 = vmatpush1.xpose.msra.mxu0 0.0
  %46 = vmatprep.subr.mxu0 0.0
  %47 = vmatpush1.xpose.msra.mxu0 0.0
  %48 = vmatprep.subr.mxu0 0.0
  %49 = vmatpush1.xpose.msra.mxu0 0.0
  %50 = vmatprep.subr.mxu0 0.0
  %51 = vmatpush1.xpose.msra.mxu0 0.0
  %52 = vmatprep.subr.mxu0 0.0
  %53 = vmatpush1.xpose.msra.mxu0 0.0
  %54 = vmatprep.subr.mxu0 0.0
  %55 = vmatpush1.xpose.msra.mxu0 0.0
  %56 = vmatprep.subr.mxu0 0.0
  %57 = vmatpush1.xpose.msra.mxu0 0.0
  %58 = vmatprep.subr.mxu0 0.0
  %59 = vmatpush1.xpose.msra.mxu0 0.0
  %60 = vmatprep.subr.mxu0 0.0
  %61 = vmatpush1.xpose.msra.mxu0 0.0
  %62 = vmatprep.subr.mxu0 0.0
  %63 = vmatpush1.xpose.msra.mxu0 0.0
  %64 = vmatprep.subr.mxu0 0.0
  %65 = vmatpush1.xpose.msra.mxu0 0.0
  %66 = vmatprep.subr.mxu0 0.0
  %67 = vmatpush1.xpose.msra.mxu0 0.0
  %68 = vmatprep.subr.mxu0 0.0
  %69 = vmatpush1.xpose.msra.mxu0 0.0
  %70 = vmatprep.subr.mxu0 0.0
  %71 = vmatpush1.xpose.msra.mxu0 0.0
  %72 = vmatprep.subr.mxu0 0.0
  %73 = vmatpush1.xpose.msra.mxu0 0.0
  %74 = vmatprep.subr.mxu0 0.0
  %75 = vmatpush1.xpose.msra.mxu0 0.0
  %76 = vmatprep.subr.mxu0 0.0
  %77 = vmatpush1.xpose.msra.mxu0 0.0
  %78 = vmatprep.subr.mxu0 0.0
  %79 = vmatpush1.xpose.msra.mxu0 0.0
  %80 = vmatprep.subr.mxu0 0.0
  %81 = vmatpush1.xpose.msra.mxu0 0.0
  %82 = vmatprep.subr.mxu0 0.0
  %83 = vmatpush1.xpose.msra.mxu0 0.0
  %84 = vmatprep.subr.mxu0 0.0
  %85 = vmatpush1.xpose.msra.mxu0 0.0
  %86 = vmatprep.subr.mxu0 0.0
  %87 = vmatpush1.xpose.msra.mxu0 0.0
  %88 = vmatprep.subr.mxu0 0.0
  %89 = vmatpush1.xpose.msra.mxu0 0.0
  %90 = vmatprep.subr.mxu0 0.0
  %91 = vmatpush1.xpose.msra.mxu0 0.0
  %92 = vmatprep.subr.mxu0 0.0
  %93 = vmatpush1.xpose.msra.mxu0 0.0
  %94 = vmatprep.mubr.f32.mxu0 0.0
  %95 = vmatmul.mubr.f32.gmra.mrb[0].mxu0 %v25
  %v96 = vpop.f32.mrb[0].mxu0
  %v97 = vadd.f32 %v21, %v96
  %v98 = vpop.f32.mrb[0].mxu0
  %99 = vdwg.mxu0
  %vm100 = vcmask 60416
  %101 = vst.msk [vmem:[%s3] sm:$0xf] %vm100, %v97
  %s102 = scalar_lea.vmem %s0, 4
  %v103 = vld [vmem:[%s102] sm:$0xf]
  %s104 = scalar_lea.vmem %s1, 8
  %v105 = vld [vmem:[%s104] sm:$0xff]
  %s106 = scalar_lea.vmem %s2, 1
  %v107 = vld [vmem:[%s106] sm:$0x1]
  %v109 = vlaneseq
  %v110 = vshrl.u32 %v109, 7
  %v111 = vsub.s32 0, %v110
  %v112 = vrot.slane %v107, %v111
  %v115 = vsel %vm23, %v103, 0
  %v118 = vsel %vm23, %v105, 0
  %120 = vmatprep.subr.mxu0 0.0
  %121 = vmatpush1.xpose.msra.mxu0 %v118
  %122 = vmatprep.subr.mxu0 0.0
  %123 = vmatpush1.xpose.msra.mxu0 0.0
  %124 = vmatprep.subr.mxu0 0.0
  %125 = vmatpush1.xpose.msra.mxu0 0.0
  %126 = vmatprep.subr.mxu0 0.0
  %127 = vmatpush1.xpose.msra.mxu0 0.0
  %128 = vmatprep.subr.mxu0 0.0
  %129 = vmatpush1.xpose.msra.mxu0 0.0
  %130 = vmatprep.subr.mxu0 0.0
  %131 = vmatpush1.xpose.msra.mxu0 0.0
  %132 = vmatprep.subr.mxu0 0.0
  %133 = vmatpush1.xpose.msra.mxu0 0.0
  %134 = vmatprep.subr.mxu0 0.0
  %135 = vmatpush1.xpose.msra.mxu0 0.0
  %136 = vmatprep.subr.mxu0 0.0
  %137 = vmatpush1.xpose.msra.mxu0 0.0
  %138 = vmatprep.subr.mxu0 0.0
  %139 = vmatpush1.xpose.msra.mxu0 0.0
  %140 = vmatprep.subr.mxu0 0.0
  %141 = vmatpush1.xpose.msra.mxu0 0.0
  %142 = vmatprep.subr.mxu0 0.0
  %143 = vmatpush1.xpose.msra.mxu0 0.0
  %144 = vmatprep.subr.mxu0 0.0
  %145 = vmatpush1.xpose.msra.mxu0 0.0
  %146 = vmatprep.subr.mxu0 0.0
  %147 = vmatpush1.xpose.msra.mxu0 0.0
  %148 = vmatprep.subr.mxu0 0.0
  %149 = vmatpush1.xpose.msra.mxu0 0.0
  %150 = vmatprep.subr.mxu0 0.0
  %151 = vmatpush1.xpose.msra.mxu0 0.0
  %152 = vmatprep.subr.mxu0 0.0
  %153 = vmatpush1.xpose.msra.mxu0 0.0
  %154 = vmatprep.subr.mxu0 0.0
  %155 = vmatpush1.xpose.msra.mxu0 0.0
  %156 = vmatprep.subr.mxu0 0.0
  %157 = vmatpush1.xpose.msra.mxu0 0.0
  %158 = vmatprep.subr.mxu0 0.0
  %159 = vmatpush1.xpose.msra.mxu0 0.0
  %160 = vmatprep.subr.mxu0 0.0
  %161 = vmatpush1.xpose.msra.mxu0 0.0
  %162 = vmatprep.subr.mxu0 0.0
  %163 = vmatpush1.xpose.msra.mxu0 0.0
  %164 = vmatprep.subr.mxu0 0.0
  %165 = vmatpush1.xpose.msra.mxu0 0.0
  %166 = vmatprep.subr.mxu0 0.0
  %167 = vmatpush1.xpose.msra.mxu0 0.0
  %168 = vmatprep.subr.mxu0 0.0
  %169 = vmatpush1.xpose.msra.mxu0 0.0
  %170 = vmatprep.subr.mxu0 0.0
  %171 = vmatpush1.xpose.msra.mxu0 0.0
  %172 = vmatprep.subr.mxu0 0.0
  %173 = vmatpush1.xpose.msra.mxu0 0.0
  %174 = vmatprep.subr.mxu0 0.0
  %175 = vmatpush1.xpose.msra.mxu0 0.0
  %176 = vmatprep.subr.mxu0 0.0
  %177 = vmatpush1.xpose.msra.mxu0 0.0
  %178 = vmatprep.subr.mxu0 0.0
  %179 = vmatpush1.xpose.msra.mxu0 0.0
  %180 = vmatprep.subr.mxu0 0.0
  %181 = vmatpush1.xpose.msra.mxu0 0.0
  %182 = vmatprep.subr.mxu0 0.0
  %183 = vmatpush1.xpose.msra.mxu0 0.0
  %184 = vmatprep.mubr.f32.mxu0 0.0
  %185 = vmatmul.mubr.f32.gmra.mrb[0].mxu0 %v115
  %v186 = vpop.f32.mrb[0].mxu0
  %v187 = vadd.f32 %v112, %v186
  %v188 = vpop.f32.mrb[0].mxu0
  %189 = vdwg.mxu0
  %191 = vrot.lane.b32.xlu0 %v187, 8
  %v192 = vpop.permute.xlu0 %191
  %vm194 = vcmask 126016
  %195 = vst.msk [vmem:[%s3] sm:$0xf] %vm194, %v192
  %s196 = scalar_lea.vmem %s0, 8
  %v197 = vld [vmem:[%s196] sm:$0xf]
  %s198 = scalar_lea.vmem %s1, 16
  %v199 = vld [vmem:[%s198] sm:$0xff]
  %s200 = scalar_lea.vmem %s2, 2
  %v201 = vld [vmem:[%s200] sm:$0x1]
  %v203 = vlaneseq
  %v204 = vshrl.u32 %v203, 7
  %v205 = vsub.s32 0, %v204
  %v206 = vrot.slane %v201, %v205
  %v209 = vsel %vm23, %v197, 0
  %v212 = vsel %vm23, %v199, 0
  %214 = vmatprep.subr.mxu0 0.0
  %215 = vmatpush1.xpose.msra.mxu0 %v212
  %216 = vmatprep.subr.mxu0 0.0
  %217 = vmatpush1.xpose.msra.mxu0 0.0
  %218 = vmatprep.subr.mxu0 0.0
  %219 = vmatpush1.xpose.msra.mxu0 0.0
  %220 = vmatprep.subr.mxu0 0.0
  %221 = vmatpush1.xpose.msra.mxu0 0.0
  %222 = vmatprep.subr.mxu0 0.0
  %223 = vmatpush1.xpose.msra.mxu0 0.0
  %224 = vmatprep.subr.mxu0 0.0
  %225 = vmatpush1.xpose.msra.mxu0 0.0
  %226 = vmatprep.subr.mxu0 0.0
  %227 = vmatpush1.xpose.msra.mxu0 0.0
  %228 = vmatprep.subr.mxu0 0.0
  %229 = vmatpush1.xpose.msra.mxu0 0.0
  %230 = vmatprep.subr.mxu0 0.0
  %231 = vmatpush1.xpose.msra.mxu0 0.0
  %232 = vmatprep.subr.mxu0 0.0
  %233 = vmatpush1.xpose.msra.mxu0 0.0
  %234 = vmatprep.subr.mxu0 0.0
  %235 = vmatpush1.xpose.msra.mxu0 0.0
  %236 = vmatprep.subr.mxu0 0.0
  %237 = vmatpush1.xpose.msra.mxu0 0.0
  %238 = vmatprep.subr.mxu0 0.0
  %239 = vmatpush1.xpose.msra.mxu0 0.0
  %240 = vmatprep.subr.mxu0 0.0
  %241 = vmatpush1.xpose.msra.mxu0 0.0
  %242 = vmatprep.subr.mxu0 0.0
  %243 = vmatpush1.xpose.msra.mxu0 0.0
  %244 = vmatprep.subr.mxu0 0.0
  %245 = vmatpush1.xpose.msra.mxu0 0.0
  %246 = vmatprep.subr.mxu0 0.0
  %247 = vmatpush1.xpose.msra.mxu0 0.0
  %248 = vmatprep.subr.mxu0 0.0
  %249 = vmatpush1.xpose.msra.mxu0 0.0
  %250 = vmatprep.subr.mxu0 0.0
  %251 = vmatpush1.xpose.msra.mxu0 0.0
  %252 = vmatprep.subr.mxu0 0.0
  %253 = vmatpush1.xpose.msra.mxu0 0.0
  %254 = vmatprep.subr.mxu0 0.0
  %255 = vmatpush1.xpose.msra.mxu0 0.0
  %256 = vmatprep.subr.mxu0 0.0
  %257 = vmatpush1.xpose.msra.mxu0 0.0
  %258 = vmatprep.subr.mxu0 0.0
  %259 = vmatpush1.xpose.msra.mxu0 0.0
  %260 = vmatprep.subr.mxu0 0.0
  %261 = vmatpush1.xpose.msra.mxu0 0.0
  %262 = vmatprep.subr.mxu0 0.0
  %263 = vmatpush1.xpose.msra.mxu0 0.0
  %264 = vmatprep.subr.mxu0 0.0
  %265 = vmatpush1.xpose.msra.mxu0 0.0
  %266 = vmatprep.subr.mxu0 0.0
  %267 = vmatpush1.xpose.msra.mxu0 0.0
  %268 = vmatprep.subr.mxu0 0.0
  %269 = vmatpush1.xpose.msra.mxu0 0.0
  %270 = vmatprep.subr.mxu0 0.0
  %271 = vmatpush1.xpose.msra.mxu0 0.0
  %272 = vmatprep.subr.mxu0 0.0
  %273 = vmatpush1.xpose.msra.mxu0 0.0
  %274 = vmatprep.subr.mxu0 0.0
  %275 = vmatpush1.xpose.msra.mxu0 0.0
  %276 = vmatprep.subr.mxu0 0.0
  %277 = vmatpush1.xpose.msra.mxu0 0.0
  %278 = vmatprep.mubr.f32.mxu0 0.0
  %279 = vmatmul.mubr.f32.gmra.mrb[0].mxu0 %v209
  %v280 = vpop.f32.mrb[0].mxu0
  %v281 = vadd.f32 %v206, %v280
  %v282 = vpop.f32.mrb[0].mxu0
  %283 = vdwg.mxu0
  %285 = vrot.lane.b32.xlu0 %v281, 16
  %v286 = vpop.permute.xlu0 %285
  %vm288 = vcmask 191616
  %289 = vst.msk [vmem:[%s3] sm:$0xf] %vm288, %v286
  %s290 = scalar_lea.vmem %s0, 12
  %v291 = vld [vmem:[%s290] sm:$0xf]
  %s292 = scalar_lea.vmem %s1, 24
  %v293 = vld [vmem:[%s292] sm:$0xff]
  %s294 = scalar_lea.vmem %s2, 3
  %v295 = vld [vmem:[%s294] sm:$0x1]
  %v297 = vlaneseq
  %v298 = vshrl.u32 %v297, 7
  %v299 = vsub.s32 0, %v298
  %v300 = vrot.slane %v295, %v299
  %v303 = vsel %vm23, %v291, 0
  %v306 = vsel %vm23, %v293, 0
  %308 = vmatprep.subr.mxu0 0.0
  %309 = vmatpush1.xpose.msra.mxu0 %v306
  %310 = vmatprep.subr.mxu0 0.0
  %311 = vmatpush1.xpose.msra.mxu0 0.0
  %312 = vmatprep.subr.mxu0 0.0
  %313 = vmatpush1.xpose.msra.mxu0 0.0
  %314 = vmatprep.subr.mxu0 0.0
  %315 = vmatpush1.xpose.msra.mxu0 0.0
  %316 = vmatprep.subr.mxu0 0.0
  %317 = vmatpush1.xpose.msra.mxu0 0.0
  %318 = vmatprep.subr.mxu0 0.0
  %319 = vmatpush1.xpose.msra.mxu0 0.0
  %320 = vmatprep.subr.mxu0 0.0
  %321 = vmatpush1.xpose.msra.mxu0 0.0
  %322 = vmatprep.subr.mxu0 0.0
  %323 = vmatpush1.xpose.msra.mxu0 0.0
  %324 = vmatprep.subr.mxu0 0.0
  %325 = vmatpush1.xpose.msra.mxu0 0.0
  %326 = vmatprep.subr.mxu0 0.0
  %327 = vmatpush1.xpose.msra.mxu0 0.0
  %328 = vmatprep.subr.mxu0 0.0
  %329 = vmatpush1.xpose.msra.mxu0 0.0
  %330 = vmatprep.subr.mxu0 0.0
  %331 = vmatpush1.xpose.msra.mxu0 0.0
  %332 = vmatprep.subr.mxu0 0.0
  %333 = vmatpush1.xpose.msra.mxu0 0.0
  %334 = vmatprep.subr.mxu0 0.0
  %335 = vmatpush1.xpose.msra.mxu0 0.0
  %336 = vmatprep.subr.mxu0 0.0
  %337 = vmatpush1.xpose.msra.mxu0 0.0
  %338 = vmatprep.subr.mxu0 0.0
  %339 = vmatpush1.xpose.msra.mxu0 0.0
  %340 = vmatprep.subr.mxu0 0.0
  %341 = vmatpush1.xpose.msra.mxu0 0.0
  %342 = vmatprep.subr.mxu0 0.0
  %343 = vmatpush1.xpose.msra.mxu0 0.0
  %344 = vmatprep.subr.mxu0 0.0
  %345 = vmatpush1.xpose.msra.mxu0 0.0
  %346 = vmatprep.subr.mxu0 0.0
  %347 = vmatpush1.xpose.msra.mxu0 0.0
  %348 = vmatprep.subr.mxu0 0.0
  %349 = vmatpush1.xpose.msra.mxu0 0.0
  %350 = vmatprep.subr.mxu0 0.0
  %351 = vmatpush1.xpose.msra.mxu0 0.0
  %352 = vmatprep.subr.mxu0 0.0
  %353 = vmatpush1.xpose.msra.mxu0 0.0
  %354 = vmatprep.subr.mxu0 0.0
  %355 = vmatpush1.xpose.msra.mxu0 0.0
  %356 = vmatprep.subr.mxu0 0.0
  %357 = vmatpush1.xpose.msra.mxu0 0.0
  %358 = vmatprep.subr.mxu0 0.0
  %359 = vmatpush1.xpose.msra.mxu0 0.0
  %360 = vmatprep.subr.mxu0 0.0
  %361 = vmatpush1.xpose.msra.mxu0 0.0
  %362 = vmatprep.subr.mxu0 0.0
  %363 = vmatpush1.xpose.msra.mxu0 0.0
  %364 = vmatprep.subr.mxu0 0.0
  %365 = vmatpush1.xpose.msra.mxu0 0.0
  %366 = vmatprep.subr.mxu0 0.0
  %367 = vmatpush1.xpose.msra.mxu0 0.0
  %368 = vmatprep.subr.mxu0 0.0
  %369 = vmatpush1.xpose.msra.mxu0 0.0
  %370 = vmatprep.subr.mxu0 0.0
  %371 = vmatpush1.xpose.msra.mxu0 0.0
  %372 = vmatprep.mubr.f32.mxu0 0.0
  %373 = vmatmul.mubr.f32.gmra.mrb[0].mxu0 %v303
  %v374 = vpop.f32.mrb[0].mxu0
  %v375 = vadd.f32 %v300, %v374
  %v376 = vpop.f32.mrb[0].mxu0
  %377 = vdwg.mxu0
  %379 = vrot.lane.b32.xlu0 %v375, 24
  %v380 = vpop.permute.xlu0 %379
  %vm382 = vcmask 257216
  %383 = vst.msk [vmem:[%s3] sm:$0xf] %vm382, %v380
  %s384 = scalar_lea.vmem %s0, 16
  %v385 = vld [vmem:[%s384] sm:$0xf]
  %s386 = scalar_lea.vmem %s1, 32
  %v387 = vld [vmem:[%s386] sm:$0xff]
  %s388 = scalar_lea.vmem %s2, 4
  %v389 = vld [vmem:[%s388] sm:$0x1]
  %v391 = vlaneseq
  %v392 = vshrl.u32 %v391, 7
  %v393 = vsub.s32 0, %v392
  %v394 = vrot.slane %v389, %v393
  %v397 = vsel %vm23, %v385, 0
  %v400 = vsel %vm23, %v387, 0
  %402 = vmatprep.subr.mxu0 0.0
  %403 = vmatpush1.xpose.msra.mxu0 %v400
  %404 = vmatprep.subr.mxu0 0.0
  %405 = vmatpush1.xpose.msra.mxu0 0.0
  %406 = vmatprep.subr.mxu0 0.0
  %407 = vmatpush1.xpose.msra.mxu0 0.0
  %408 = vmatprep.subr.mxu0 0.0
  %409 = vmatpush1.xpose.msra.mxu0 0.0
  %410 = vmatprep.subr.mxu0 0.0
  %411 = vmatpush1.xpose.msra.mxu0 0.0
  %412 = vmatprep.subr.mxu0 0.0
  %413 = vmatpush1.xpose.msra.mxu0 0.0
  %414 = vmatprep.subr.mxu0 0.0
  %415 = vmatpush1.xpose.msra.mxu0 0.0
  %416 = vmatprep.subr.mxu0 0.0
  %417 = vmatpush1.xpose.msra.mxu0 0.0
  %418 = vmatprep.subr.mxu0 0.0
  %419 = vmatpush1.xpose.msra.mxu0 0.0
  %420 = vmatprep.subr.mxu0 0.0
  %421 = vmatpush1.xpose.msra.mxu0 0.0
  %422 = vmatprep.subr.mxu0 0.0
  %423 = vmatpush1.xpose.msra.mxu0 0.0
  %424 = vmatprep.subr.mxu0 0.0
  %425 = vmatpush1.xpose.msra.mxu0 0.0
  %426 = vmatprep.subr.mxu0 0.0
  %427 = vmatpush1.xpose.msra.mxu0 0.0
  %428 = vmatprep.subr.mxu0 0.0
  %429 = vmatpush1.xpose.msra.mxu0 0.0
  %430 = vmatprep.subr.mxu0 0.0
  %431 = vmatpush1.xpose.msra.mxu0 0.0
  %432 = vmatprep.subr.mxu0 0.0
  %433 = vmatpush1.xpose.msra.mxu0 0.0
  %434 = vmatprep.subr.mxu0 0.0
  %435 = vmatpush1.xpose.msra.mxu0 0.0
  %436 = vmatprep.subr.mxu0 0.0
  %437 = vmatpush1.xpose.msra.mxu0 0.0
  %438 = vmatprep.subr.mxu0 0.0
  %439 = vmatpush1.xpose.msra.mxu0 0.0
  %440 = vmatprep.subr.mxu0 0.0
  %441 = vmatpush1.xpose.msra.mxu0 0.0
  %442 = vmatprep.subr.mxu0 0.0
  %443 = vmatpush1.xpose.msra.mxu0 0.0
  %444 = vmatprep.subr.mxu0 0.0
  %445 = vmatpush1.xpose.msra.mxu0 0.0
  %446 = vmatprep.subr.mxu0 0.0
  %447 = vmatpush1.xpose.msra.mxu0 0.0
  %448 = vmatprep.subr.mxu0 0.0
  %449 = vmatpush1.xpose.msra.mxu0 0.0
  %450 = vmatprep.subr.mxu0 0.0
  %451 = vmatpush1.xpose.msra.mxu0 0.0
  %452 = vmatprep.subr.mxu0 0.0
  %453 = vmatpush1.xpose.msra.mxu0 0.0
  %454 = vmatprep.subr.mxu0 0.0
  %455 = vmatpush1.xpose.msra.mxu0 0.0
  %456 = vmatprep.subr.mxu0 0.0
  %457 = vmatpush1.xpose.msra.mxu0 0.0
  %458 = vmatprep.subr.mxu0 0.0
  %459 = vmatpush1.xpose.msra.mxu0 0.0
  %460 = vmatprep.subr.mxu0 0.0
  %461 = vmatpush1.xpose.msra.mxu0 0.0
  %462 = vmatprep.subr.mxu0 0.0
  %463 = vmatpush1.xpose.msra.mxu0 0.0
  %464 = vmatprep.subr.mxu0 0.0
  %465 = vmatpush1.xpose.msra.mxu0 0.0
  %466 = vmatprep.mubr.f32.mxu0 0.0
  %467 = vmatmul.mubr.f32.gmra.mrb[0].mxu0 %v397
  %v468 = vpop.f32.mrb[0].mxu0
  %v469 = vadd.f32 %v394, %v468
  %v470 = vpop.f32.mrb[0].mxu0
  %471 = vdwg.mxu0
  %473 = vrot.lane.b32.xlu0 %v469, 32
  %v474 = vpop.permute.xlu0 %473
  %vm476 = vcmask 322816
  %477 = vst.msk [vmem:[%s3] sm:$0xf] %vm476, %v474
  %s478 = scalar_lea.vmem %s0, 20
  %v479 = vld [vmem:[%s478] sm:$0xf]
  %s480 = scalar_lea.vmem %s1, 40
  %v481 = vld [vmem:[%s480] sm:$0xff]
  %s482 = scalar_lea.vmem %s2, 5
  %v483 = vld [vmem:[%s482] sm:$0x1]
  %v485 = vlaneseq
  %v486 = vshrl.u32 %v485, 7
  %v487 = vsub.s32 0, %v486
  %v488 = vrot.slane %v483, %v487
  %v491 = vsel %vm23, %v479, 0
  %v494 = vsel %vm23, %v481, 0
  %496 = vmatprep.subr.mxu0 0.0
  %497 = vmatpush1.xpose.msra.mxu0 %v494
  %498 = vmatprep.subr.mxu0 0.0
  %499 = vmatpush1.xpose.msra.mxu0 0.0
  %500 = vmatprep.subr.mxu0 0.0
  %501 = vmatpush1.xpose.msra.mxu0 0.0
  %502 = vmatprep.subr.mxu0 0.0
  %503 = vmatpush1.xpose.msra.mxu0 0.0
  %504 = vmatprep.subr.mxu0 0.0
  %505 = vmatpush1.xpose.msra.mxu0 0.0
  %506 = vmatprep.subr.mxu0 0.0
  %507 = vmatpush1.xpose.msra.mxu0 0.0
  %508 = vmatprep.subr.mxu0 0.0
  %509 = vmatpush1.xpose.msra.mxu0 0.0
  %510 = vmatprep.subr.mxu0 0.0
  %511 = vmatpush1.xpose.msra.mxu0 0.0
  %512 = vmatprep.subr.mxu0 0.0
  %513 = vmatpush1.xpose.msra.mxu0 0.0
  %514 = vmatprep.subr.mxu0 0.0
  %515 = vmatpush1.xpose.msra.mxu0 0.0
  %516 = vmatprep.subr.mxu0 0.0
  %517 = vmatpush1.xpose.msra.mxu0 0.0
  %518 = vmatprep.subr.mxu0 0.0
  %519 = vmatpush1.xpose.msra.mxu0 0.0
  %520 = vmatprep.subr.mxu0 0.0
  %521 = vmatpush1.xpose.msra.mxu0 0.0
  %522 = vmatprep.subr.mxu0 0.0
  %523 = vmatpush1.xpose.msra.mxu0 0.0
  %524 = vmatprep.subr.mxu0 0.0
  %525 = vmatpush1.xpose.msra.mxu0 0.0
  %526 = vmatprep.subr.mxu0 0.0
  %527 = vmatpush1.xpose.msra.mxu0 0.0
  %528 = vmatprep.subr.mxu0 0.0
  %529 = vmatpush1.xpose.msra.mxu0 0.0
  %530 = vmatprep.subr.mxu0 0.0
  %531 = vmatpush1.xpose.msra.mxu0 0.0
  %532 = vmatprep.subr.mxu0 0.0
  %533 = vmatpush1.xpose.msra.mxu0 0.0
  %534 = vmatprep.subr.mxu0 0.0
  %535 = vmatpush1.xpose.msra.mxu0 0.0
  %536 = vmatprep.subr.mxu0 0.0
  %537 = vmatpush1.xpose.msra.mxu0 0.0
  %538 = vmatprep.subr.mxu0 0.0
  %539 = vmatpush1.xpose.msra.mxu0 0.0
  %540 = vmatprep.subr.mxu0 0.0
  %541 = vmatpush1.xpose.msra.mxu0 0.0
  %542 = vmatprep.subr.mxu0 0.0
  %543 = vmatpush1.xpose.msra.mxu0 0.0
  %544 = vmatprep.subr.mxu0 0.0
  %545 = vmatpush1.xpose.msra.mxu0 0.0
  %546 = vmatprep.subr.mxu0 0.0
  %547 = vmatpush1.xpose.msra.mxu0 0.0
  %548 = vmatprep.subr.mxu0 0.0
  %549 = vmatpush1.xpose.msra.mxu0 0.0
  %550 = vmatprep.subr.mxu0 0.0
  %551 = vmatpush1.xpose.msra.mxu0 0.0
  %552 = vmatprep.subr.mxu0 0.0
  %553 = vmatpush1.xpose.msra.mxu0 0.0
  %554 = vmatprep.subr.mxu0 0.0
  %555 = vmatpush1.xpose.msra.mxu0 0.0
  %556 = vmatprep.subr.mxu0 0.0
  %557 = vmatpush1.xpose.msra.mxu0 0.0
  %558 = vmatprep.subr.mxu0 0.0
  %559 = vmatpush1.xpose.msra.mxu0 0.0
  %560 = vmatprep.mubr.f32.mxu0 0.0
  %561 = vmatmul.mubr.f32.gmra.mrb[0].mxu0 %v491
  %v562 = vpop.f32.mrb[0].mxu0
  %v563 = vadd.f32 %v488, %v562
  %v564 = vpop.f32.mrb[0].mxu0
  %565 = vdwg.mxu0
  %567 = vrot.lane.b32.xlu0 %v563, 40
  %v568 = vpop.permute.xlu0 %567
  %vm570 = vcmask 388416
  %571 = vst.msk [vmem:[%s3] sm:$0xf] %vm570, %v568
  %s572 = scalar_lea.vmem %s0, 24
  %v573 = vld [vmem:[%s572] sm:$0xf]
  %s574 = scalar_lea.vmem %s1, 48
  %v575 = vld [vmem:[%s574] sm:$0xff]
  %s576 = scalar_lea.vmem %s2, 6
  %v577 = vld [vmem:[%s576] sm:$0x1]
  %v579 = vlaneseq
  %v580 = vshrl.u32 %v579, 7
  %v581 = vsub.s32 0, %v580
  %v582 = vrot.slane %v577, %v581
  %v585 = vsel %vm23, %v573, 0
  %v588 = vsel %vm23, %v575, 0
  %590 = vmatprep.subr.mxu0 0.0
  %591 = vmatpush1.xpose.msra.mxu0 %v588
  %592 = vmatprep.subr.mxu0 0.0
  %593 = vmatpush1.xpose.msra.mxu0 0.0
  %594 = vmatprep.subr.mxu0 0.0
  %595 = vmatpush1.xpose.msra.mxu0 0.0
  %596 = vmatprep.subr.mxu0 0.0
  %597 = vmatpush1.xpose.msra.mxu0 0.0
  %598 = vmatprep.subr.mxu0 0.0
  %599 = vmatpush1.xpose.msra.mxu0 0.0
  %600 = vmatprep.subr.mxu0 0.0
  %601 = vmatpush1.xpose.msra.mxu0 0.0
  %602 = vmatprep.subr.mxu0 0.0
  %603 = vmatpush1.xpose.msra.mxu0 0.0
  %604 = vmatprep.subr.mxu0 0.0
  %605 = vmatpush1.xpose.msra.mxu0 0.0
  %606 = vmatprep.subr.mxu0 0.0
  %607 = vmatpush1.xpose.msra.mxu0 0.0
  %608 = vmatprep.subr.mxu0 0.0
  %609 = vmatpush1.xpose.msra.mxu0 0.0
  %610 = vmatprep.subr.mxu0 0.0
  %611 = vmatpush1.xpose.msra.mxu0 0.0
  %612 = vmatprep.subr.mxu0 0.0
  %613 = vmatpush1.xpose.msra.mxu0 0.0
  %614 = vmatprep.subr.mxu0 0.0
  %615 = vmatpush1.xpose.msra.mxu0 0.0
  %616 = vmatprep.subr.mxu0 0.0
  %617 = vmatpush1.xpose.msra.mxu0 0.0
  %618 = vmatprep.subr.mxu0 0.0
  %619 = vmatpush1.xpose.msra.mxu0 0.0
  %620 = vmatprep.subr.mxu0 0.0
  %621 = vmatpush1.xpose.msra.mxu0 0.0
  %622 = vmatprep.subr.mxu0 0.0
  %623 = vmatpush1.xpose.msra.mxu0 0.0
  %624 = vmatprep.subr.mxu0 0.0
  %625 = vmatpush1.xpose.msra.mxu0 0.0
  %626 = vmatprep.subr.mxu0 0.0
  %627 = vmatpush1.xpose.msra.mxu0 0.0
  %628 = vmatprep.subr.mxu0 0.0
  %629 = vmatpush1.xpose.msra.mxu0 0.0
  %630 = vmatprep.subr.mxu0 0.0
  %631 = vmatpush1.xpose.msra.mxu0 0.0
  %632 = vmatprep.subr.mxu0 0.0
  %633 = vmatpush1.xpose.msra.mxu0 0.0
  %634 = vmatprep.subr.mxu0 0.0
  %635 = vmatpush1.xpose.msra.mxu0 0.0
  %636 = vmatprep.subr.mxu0 0.0
  %637 = vmatpush1.xpose.msra.mxu0 0.0
  %638 = vmatprep.subr.mxu0 0.0
  %639 = vmatpush1.xpose.msra.mxu0 0.0
  %640 = vmatprep.subr.mxu0 0.0
  %641 = vmatpush1.xpose.msra.mxu0 0.0
  %642 = vmatprep.subr.mxu0 0.0
  %643 = vmatpush1.xpose.msra.mxu0 0.0
  %644 = vmatprep.subr.mxu0 0.0
  %645 = vmatpush1.xpose.msra.mxu0 0.0
  %646 = vmatprep.subr.mxu0 0.0
  %647 = vmatpush1.xpose.msra.mxu0 0.0
  %648 = vmatprep.subr.mxu0 0.0
  %649 = vmatpush1.xpose.msra.mxu0 0.0
  %650 = vmatprep.subr.mxu0 0.0
  %651 = vmatpush1.xpose.msra.mxu0 0.0
  %652 = vmatprep.subr.mxu0 0.0
  %653 = vmatpush1.xpose.msra.mxu0 0.0
  %654 = vmatprep.mubr.f32.mxu0 0.0
  %655 = vmatmul.mubr.f32.gmra.mrb[0].mxu0 %v585
  %v656 = vpop.f32.mrb[0].mxu0
  %v657 = vadd.f32 %v582, %v656
  %v658 = vpop.f32.mrb[0].mxu0
  %659 = vdwg.mxu0
  %661 = vrot.lane.b32.xlu0 %v657, 48
  %v662 = vpop.permute.xlu0 %661
  %vm664 = vcmask 454016
  %665 = vst.msk [vmem:[%s3] sm:$0xf] %vm664, %v662
  %s666 = scalar_lea.vmem %s0, 28
  %v667 = vld [vmem:[%s666] sm:$0xf]
  %s668 = scalar_lea.vmem %s1, 56
  %v669 = vld [vmem:[%s668] sm:$0xff]
  %s670 = scalar_lea.vmem %s2, 7
  %v671 = vld [vmem:[%s670] sm:$0x1]
  %v673 = vlaneseq
  %v674 = vshrl.u32 %v673, 7
  %v675 = vsub.s32 0, %v674
  %v676 = vrot.slane %v671, %v675
  %v679 = vsel %vm23, %v667, 0
  %v682 = vsel %vm23, %v669, 0
  %684 = vmatprep.subr.mxu0 0.0
  %685 = vmatpush1.xpose.msra.mxu0 %v682
  %686 = vmatprep.subr.mxu0 0.0
  %687 = vmatpush1.xpose.msra.mxu0 0.0
  %688 = vmatprep.subr.mxu0 0.0
  %689 = vmatpush1.xpose.msra.mxu0 0.0
  %690 = vmatprep.subr.mxu0 0.0
  %691 = vmatpush1.xpose.msra.mxu0 0.0
  %692 = vmatprep.subr.mxu0 0.0
  %693 = vmatpush1.xpose.msra.mxu0 0.0
  %694 = vmatprep.subr.mxu0 0.0
  %695 = vmatpush1.xpose.msra.mxu0 0.0
  %696 = vmatprep.subr.mxu0 0.0
  %697 = vmatpush1.xpose.msra.mxu0 0.0
  %698 = vmatprep.subr.mxu0 0.0
  %699 = vmatpush1.xpose.msra.mxu0 0.0
  %700 = vmatprep.subr.mxu0 0.0
  %701 = vmatpush1.xpose.msra.mxu0 0.0
  %702 = vmatprep.subr.mxu0 0.0
  %703 = vmatpush1.xpose.msra.mxu0 0.0
  %704 = vmatprep.subr.mxu0 0.0
  %705 = vmatpush1.xpose.msra.mxu0 0.0
  %706 = vmatprep.subr.mxu0 0.0
  %707 = vmatpush1.xpose.msra.mxu0 0.0
  %708 = vmatprep.subr.mxu0 0.0
  %709 = vmatpush1.xpose.msra.mxu0 0.0
  %710 = vmatprep.subr.mxu0 0.0
  %711 = vmatpush1.xpose.msra.mxu0 0.0
  %712 = vmatprep.subr.mxu0 0.0
  %713 = vmatpush1.xpose.msra.mxu0 0.0
  %714 = vmatprep.subr.mxu0 0.0
  %715 = vmatpush1.xpose.msra.mxu0 0.0
  %716 = vmatprep.subr.mxu0 0.0
  %717 = vmatpush1.xpose.msra.mxu0 0.0
  %718 = vmatprep.subr.mxu0 0.0
  %719 = vmatpush1.xpose.msra.mxu0 0.0
  %720 = vmatprep.subr.mxu0 0.0
  %721 = vmatpush1.xpose.msra.mxu0 0.0
  %722 = vmatprep.subr.mxu0 0.0
  %723 = vmatpush1.xpose.msra.mxu0 0.0
  %724 = vmatprep.subr.mxu0 0.0
  %725 = vmatpush1.xpose.msra.mxu0 0.0
  %726 = vmatprep.subr.mxu0 0.0
  %727 = vmatpush1.xpose.msra.mxu0 0.0
  %728 = vmatprep.subr.mxu0 0.0
  %729 = vmatpush1.xpose.msra.mxu0 0.0
  %730 = vmatprep.subr.mxu0 0.0
  %731 = vmatpush1.xpose.msra.mxu0 0.0
  %732 = vmatprep.subr.mxu0 0.0
  %733 = vmatpush1.xpose.msra.mxu0 0.0
  %734 = vmatprep.subr.mxu0 0.0
  %735 = vmatpush1.xpose.msra.mxu0 0.0
  %736 = vmatprep.subr.mxu0 0.0
  %737 = vmatpush1.xpose.msra.mxu0 0.0
  %738 = vmatprep.subr.mxu0 0.0
  %739 = vmatpush1.xpose.msra.mxu0 0.0
  %740 = vmatprep.subr.mxu0 0.0
  %741 = vmatpush1.xpose.msra.mxu0 0.0
  %742 = vmatprep.subr.mxu0 0.0
  %743 = vmatpush1.xpose.msra.mxu0 0.0
  %744 = vmatprep.subr.mxu0 0.0
  %745 = vmatpush1.xpose.msra.mxu0 0.0
  %746 = vmatprep.subr.mxu0 0.0
  %747 = vmatpush1.xpose.msra.mxu0 0.0
  %748 = vmatprep.mubr.f32.mxu0 0.0
  %749 = vmatmul.mubr.f32.gmra.mrb[0].mxu0 %v679
  %v750 = vpop.f32.mrb[0].mxu0
  %v751 = vadd.f32 %v676, %v750
  %v752 = vpop.f32.mrb[0].mxu0
  %753 = vdwg.mxu0
  %755 = vrot.lane.b32.xlu0 %v751, 56
  %v756 = vpop.permute.xlu0 %755
  %vm758 = vcmask 519616
  %759 = vst.msk [vmem:[%s3] sm:$0xf] %vm758, %v756
  %s760 = scalar_lea.vmem %s0, 32
  %v761 = vld [vmem:[%s760] sm:$0xf]
  %s762 = scalar_lea.vmem %s1, 64
  %v763 = vld [vmem:[%s762] sm:$0xff]
  %s764 = scalar_lea.vmem %s2, 8
  %v765 = vld [vmem:[%s764] sm:$0x1]
  %v767 = vlaneseq
  %v768 = vshrl.u32 %v767, 7
  %v769 = vsub.s32 0, %v768
  %v770 = vrot.slane %v765, %v769
  %v773 = vsel %vm23, %v761, 0
  %v776 = vsel %vm23, %v763, 0
  %778 = vmatprep.subr.mxu0 0.0
  %779 = vmatpush1.xpose.msra.mxu0 %v776
  %780 = vmatprep.subr.mxu0 0.0
  %781 = vmatpush1.xpose.msra.mxu0 0.0
  %782 = vmatprep.subr.mxu0 0.0
  %783 = vmatpush1.xpose.msra.mxu0 0.0
  %784 = vmatprep.subr.mxu0 0.0
  %785 = vmatpush1.xpose.msra.mxu0 0.0
  %786 = vmatprep.subr.mxu0 0.0
  %787 = vmatpush1.xpose.msra.mxu0 0.0
  %788 = vmatprep.subr.mxu0 0.0
  %789 = vmatpush1.xpose.msra.mxu0 0.0
  %790 = vmatprep.subr.mxu0 0.0
  %791 = vmatpush1.xpose.msra.mxu0 0.0
  %792 = vmatprep.subr.mxu0 0.0
  %793 = vmatpush1.xpose.msra.mxu0 0.0
  %794 = vmatprep.subr.mxu0 0.0
  %795 = vmatpush1.xpose.msra.mxu0 0.0
  %796 = vmatprep.subr.mxu0 0.0
  %797 = vmatpush1.xpose.msra.mxu0 0.0
  %798 = vmatprep.subr.mxu0 0.0
  %799 = vmatpush1.xpose.msra.mxu0 0.0
  %800 = vmatprep.subr.mxu0 0.0
  %801 = vmatpush1.xpose.msra.mxu0 0.0
  %802 = vmatprep.subr.mxu0 0.0
  %803 = vmatpush1.xpose.msra.mxu0 0.0
  %804 = vmatprep.subr.mxu0 0.0
  %805 = vmatpush1.xpose.msra.mxu0 0.0
  %806 = vmatprep.subr.mxu0 0.0
  %807 = vmatpush1.xpose.msra.mxu0 0.0
  %808 = vmatprep.subr.mxu0 0.0
  %809 = vmatpush1.xpose.msra.mxu0 0.0
  %810 = vmatprep.subr.mxu0 0.0
  %811 = vmatpush1.xpose.msra.mxu0 0.0
  %812 = vmatprep.subr.mxu0 0.0
  %813 = vmatpush1.xpose.msra.mxu0 0.0
  %814 = vmatprep.subr.mxu0 0.0
  %815 = vmatpush1.xpose.msra.mxu0 0.0
  %816 = vmatprep.subr.mxu0 0.0
  %817 = vmatpush1.xpose.msra.mxu0 0.0
  %818 = vmatprep.subr.mxu0 0.0
  %819 = vmatpush1.xpose.msra.mxu0 0.0
  %820 = vmatprep.subr.mxu0 0.0
  %821 = vmatpush1.xpose.msra.mxu0 0.0
  %822 = vmatprep.subr.mxu0 0.0
  %823 = vmatpush1.xpose.msra.mxu0 0.0
  %824 = vmatprep.subr.mxu0 0.0
  %825 = vmatpush1.xpose.msra.mxu0 0.0
  %826 = vmatprep.subr.mxu0 0.0
  %827 = vmatpush1.xpose.msra.mxu0 0.0
  %828 = vmatprep.subr.mxu0 0.0
  %829 = vmatpush1.xpose.msra.mxu0 0.0
  %830 = vmatprep.subr.mxu0 0.0
  %831 = vmatpush1.xpose.msra.mxu0 0.0
  %832 = vmatprep.subr.mxu0 0.0
  %833 = vmatpush1.xpose.msra.mxu0 0.0
  %834 = vmatprep.subr.mxu0 0.0
  %835 = vmatpush1.xpose.msra.mxu0 0.0
  %836 = vmatprep.subr.mxu0 0.0
  %837 = vmatpush1.xpose.msra.mxu0 0.0
  %838 = vmatprep.subr.mxu0 0.0
  %839 = vmatpush1.xpose.msra.mxu0 0.0
  %840 = vmatprep.subr.mxu0 0.0
  %841 = vmatpush1.xpose.msra.mxu0 0.0
  %842 = vmatprep.mubr.f32.mxu0 0.0
  %843 = vmatmul.mubr.f32.gmra.mrb[0].mxu0 %v773
  %v844 = vpop.f32.mrb[0].mxu0
  %v845 = vadd.f32 %v770, %v844
  %v846 = vpop.f32.mrb[0].mxu0
  %847 = vdwg.mxu0
  %849 = vrot.lane.b32.xlu0 %v845, 64
  %v850 = vpop.permute.xlu0 %849
  %vm852 = vcmask 585216
  %853 = vst.msk [vmem:[%s3] sm:$0xf] %vm852, %v850
  %s854 = scalar_lea.vmem %s0, 36
  %v855 = vld [vmem:[%s854] sm:$0xf]
  %s856 = scalar_lea.vmem %s1, 72
  %v857 = vld [vmem:[%s856] sm:$0xff]
  %s858 = scalar_lea.vmem %s2, 9
  %v859 = vld [vmem:[%s858] sm:$0x1]
  %v861 = vlaneseq
  %v862 = vshrl.u32 %v861, 7
  %v863 = vsub.s32 0, %v862
  %v864 = vrot.slane %v859, %v863
  %v867 = vsel %vm23, %v855, 0
  %v870 = vsel %vm23, %v857, 0
  %872 = vmatprep.subr.mxu0 0.0
  %873 = vmatpush1.xpose.msra.mxu0 %v870
  %874 = vmatprep.subr.mxu0 0.0
  %875 = vmatpush1.xpose.msra.mxu0 0.0
  %876 = vmatprep.subr.mxu0 0.0
  %877 = vmatpush1.xpose.msra.mxu0 0.0
  %878 = vmatprep.subr.mxu0 0.0
  %879 = vmatpush1.xpose.msra.mxu0 0.0
  %880 = vmatprep.subr.mxu0 0.0
  %881 = vmatpush1.xpose.msra.mxu0 0.0
  %882 = vmatprep.subr.mxu0 0.0
  %883 = vmatpush1.xpose.msra.mxu0 0.0
  %884 = vmatprep.subr.mxu0 0.0
  %885 = vmatpush1.xpose.msra.mxu0 0.0
  %886 = vmatprep.subr.mxu0 0.0
  %887 = vmatpush1.xpose.msra.mxu0 0.0
  %888 = vmatprep.subr.mxu0 0.0
  %889 = vmatpush1.xpose.msra.mxu0 0.0
  %890 = vmatprep.subr.mxu0 0.0
  %891 = vmatpush1.xpose.msra.mxu0 0.0
  %892 = vmatprep.subr.mxu0 0.0
  %893 = vmatpush1.xpose.msra.mxu0 0.0
  %894 = vmatprep.subr.mxu0 0.0
  %895 = vmatpush1.xpose.msra.mxu0 0.0
  %896 = vmatprep.subr.mxu0 0.0
  %897 = vmatpush1.xpose.msra.mxu0 0.0
  %898 = vmatprep.subr.mxu0 0.0
  %899 = vmatpush1.xpose.msra.mxu0 0.0
  %900 = vmatprep.subr.mxu0 0.0
  %901 = vmatpush1.xpose.msra.mxu0 0.0
  %902 = vmatprep.subr.mxu0 0.0
  %903 = vmatpush1.xpose.msra.mxu0 0.0
  %904 = vmatprep.subr.mxu0 0.0
  %905 = vmatpush1.xpose.msra.mxu0 0.0
  %906 = vmatprep.subr.mxu0 0.0
  %907 = vmatpush1.xpose.msra.mxu0 0.0
  %908 = vmatprep.subr.mxu0 0.0
  %909 = vmatpush1.xpose.msra.mxu0 0.0
  %910 = vmatprep.subr.mxu0 0.0
  %911 = vmatpush1.xpose.msra.mxu0 0.0
  %912 = vmatprep.subr.mxu0 0.0
  %913 = vmatpush1.xpose.msra.mxu0 0.0
  %914 = vmatprep.subr.mxu0 0.0
  %915 = vmatpush1.xpose.msra.mxu0 0.0
  %916 = vmatprep.subr.mxu0 0.0
  %917 = vmatpush1.xpose.msra.mxu0 0.0
  %918 = vmatprep.subr.mxu0 0.0
  %919 = vmatpush1.xpose.msra.mxu0 0.0
  %920 = vmatprep.subr.mxu0 0.0
  %921 = vmatpush1.xpose.msra.mxu0 0.0
  %922 = vmatprep.subr.mxu0 0.0
  %923 = vmatpush1.xpose.msra.mxu0 0.0
  %924 = vmatprep.subr.mxu0 0.0
  %925 = vmatpush1.xpose.msra.mxu0 0.0
  %926 = vmatprep.subr.mxu0 0.0
  %927 = vmatpush1.xpose.msra.mxu0 0.0
  %928 = vmatprep.subr.mxu0 0.0
  %929 = vmatpush1.xpose.msra.mxu0 0.0
  %930 = vmatprep.subr.mxu0 0.0
  %931 = vmatpush1.xpose.msra.mxu0 0.0
  %932 = vmatprep.subr.mxu0 0.0
  %933 = vmatpush1.xpose.msra.mxu0 0.0
  %934 = vmatprep.subr.mxu0 0.0
  %935 = vmatpush1.xpose.msra.mxu0 0.0
  %936 = vmatprep.mubr.f32.mxu0 0.0
  %937 = vmatmul.mubr.f32.gmra.mrb[0].mxu0 %v867
  %v938 = vpop.f32.mrb[0].mxu0
  %v939 = vadd.f32 %v864, %v938
  %v940 = vpop.f32.mrb[0].mxu0
  %941 = vdwg.mxu0
  %943 = vrot.lane.b32.xlu0 %v939, 72
  %v944 = vpop.permute.xlu0 %943
  %vm946 = vcmask 650816
  %947 = vst.msk [vmem:[%s3] sm:$0xf] %vm946, %v944
  %s948 = scalar_lea.vmem %s0, 40
  %v949 = vld [vmem:[%s948] sm:$0xf]
  %s950 = scalar_lea.vmem %s1, 80
  %v951 = vld [vmem:[%s950] sm:$0xff]
  %s952 = scalar_lea.vmem %s2, 10
  %v953 = vld [vmem:[%s952] sm:$0x1]
  %v955 = vlaneseq
  %v956 = vshrl.u32 %v955, 7
  %v957 = vsub.s32 0, %v956
  %v958 = vrot.slane %v953, %v957
  %v961 = vsel %vm23, %v949, 0
  %v964 = vsel %vm23, %v951, 0
  %966 = vmatprep.subr.mxu0 0.0
  %967 = vmatpush1.xpose.msra.mxu0 %v964
  %968 = vmatprep.subr.mxu0 0.0
  %969 = vmatpush1.xpose.msra.mxu0 0.0
  %970 = vmatprep.subr.mxu0 0.0
  %971 = vmatpush1.xpose.msra.mxu0 0.0
  %972 = vmatprep.subr.mxu0 0.0
  %973 = vmatpush1.xpose.msra.mxu0 0.0
  %974 = vmatprep.subr.mxu0 0.0
  %975 = vmatpush1.xpose.msra.mxu0 0.0
  %976 = vmatprep.subr.mxu0 0.0
  %977 = vmatpush1.xpose.msra.mxu0 0.0
  %978 = vmatprep.subr.mxu0 0.0
  %979 = vmatpush1.xpose.msra.mxu0 0.0
  %980 = vmatprep.subr.mxu0 0.0
  %981 = vmatpush1.xpose.msra.mxu0 0.0
  %982 = vmatprep.subr.mxu0 0.0
  %983 = vmatpush1.xpose.msra.mxu0 0.0
  %984 = vmatprep.subr.mxu0 0.0
  %985 = vmatpush1.xpose.msra.mxu0 0.0
  %986 = vmatprep.subr.mxu0 0.0
  %987 = vmatpush1.xpose.msra.mxu0 0.0
  %988 = vmatprep.subr.mxu0 0.0
  %989 = vmatpush1.xpose.msra.mxu0 0.0
  %990 = vmatprep.subr.mxu0 0.0
  %991 = vmatpush1.xpose.msra.mxu0 0.0
  %992 = vmatprep.subr.mxu0 0.0
  %993 = vmatpush1.xpose.msra.mxu0 0.0
  %994 = vmatprep.subr.mxu0 0.0
  %995 = vmatpush1.xpose.msra.mxu0 0.0
  %996 = vmatprep.subr.mxu0 0.0
  %997 = vmatpush1.xpose.msra.mxu0 0.0
  %998 = vmatprep.subr.mxu0 0.0
  %999 = vmatpush1.xpose.msra.mxu0 0.0
  %1000 = vmatprep.subr.mxu0 0.0
  %1001 = vmatpush1.xpose.msra.mxu0 0.0
  %1002 = vmatprep.subr.mxu0 0.0
  %1003 = vmatpush1.xpose.msra.mxu0 0.0
  %1004 = vmatprep.subr.mxu0 0.0
  %1005 = vmatpush1.xpose.msra.mxu0 0.0
  %1006 = vmatprep.subr.mxu0 0.0
  %1007 = vmatpush1.xpose.msra.mxu0 0.0
  %1008 = vmatprep.subr.mxu0 0.0
  %1009 = vmatpush1.xpose.msra.mxu0 0.0
  %1010 = vmatprep.subr.mxu0 0.0
  %1011 = vmatpush1.xpose.msra.mxu0 0.0
  %1012 = vmatprep.subr.mxu0 0.0
  %1013 = vmatpush1.xpose.msra.mxu0 0.0
  %1014 = vmatprep.subr.mxu0 0.0
  %1015 = vmatpush1.xpose.msra.mxu0 0.0
  %1016 = vmatprep.subr.mxu0 0.0
  %1017 = vmatpush1.xpose.msra.mxu0 0.0
  %1018 = vmatprep.subr.mxu0 0.0
  %1019 = vmatpush1.xpose.msra.mxu0 0.0
  %1020 = vmatprep.subr.mxu0 0.0
  %1021 = vmatpush1.xpose.msra.mxu0 0.0
  %1022 = vmatprep.subr.mxu0 0.0
  %1023 = vmatpush1.xpose.msra.mxu0 0.0
  %1024 = vmatprep.subr.mxu0 0.0
  %1025 = vmatpush1.xpose.msra.mxu0 0.0
  %1026 = vmatprep.subr.mxu0 0.0
  %1027 = vmatpush1.xpose.msra.mxu0 0.0
  %1028 = vmatprep.subr.mxu0 0.0
  %1029 = vmatpush1.xpose.msra.mxu0 0.0
  %1030 = vmatprep.mubr.f32.mxu0 0.0
  %1031 = vmatmul.mubr.f32.gmra.mrb[0].mxu0 %v961
  %v1032 = vpop.f32.mrb[0].mxu0
  %v1033 = vadd.f32 %v958, %v1032
  %v1034 = vpop.f32.mrb[0].mxu0
  %1035 = vdwg.mxu0
  %1037 = vrot.lane.b32.xlu0 %v1033, 80
  %v1038 = vpop.permute.xlu0 %1037
  %vm1040 = vcmask 716416
  %1041 = vst.msk [vmem:[%s3] sm:$0xf] %vm1040, %v1038
  %s1042 = scalar_lea.vmem %s0, 44
  %v1043 = vld [vmem:[%s1042] sm:$0xf]
  %s1044 = scalar_lea.vmem %s1, 88
  %v1045 = vld [vmem:[%s1044] sm:$0xff]
  %s1046 = scalar_lea.vmem %s2, 11
  %v1047 = vld [vmem:[%s1046] sm:$0x1]
  %v1049 = vlaneseq
  %v1050 = vshrl.u32 %v1049, 7
  %v1051 = vsub.s32 0, %v1050
  %v1052 = vrot.slane %v1047, %v1051
  %v1055 = vsel %vm23, %v1043, 0
  %v1058 = vsel %vm23, %v1045, 0
  %1060 = vmatprep.subr.mxu0 0.0
  %1061 = vmatpush1.xpose.msra.mxu0 %v1058
  %1062 = vmatprep.subr.mxu0 0.0
  %1063 = vmatpush1.xpose.msra.mxu0 0.0
  %1064 = vmatprep.subr.mxu0 0.0
  %1065 = vmatpush1.xpose.msra.mxu0 0.0
  %1066 = vmatprep.subr.mxu0 0.0
  %1067 = vmatpush1.xpose.msra.mxu0 0.0
  %1068 = vmatprep.subr.mxu0 0.0
  %1069 = vmatpush1.xpose.msra.mxu0 0.0
  %1070 = vmatprep.subr.mxu0 0.0
  %1071 = vmatpush1.xpose.msra.mxu0 0.0
  %1072 = vmatprep.subr.mxu0 0.0
  %1073 = vmatpush1.xpose.msra.mxu0 0.0
  %1074 = vmatprep.subr.mxu0 0.0
  %1075 = vmatpush1.xpose.msra.mxu0 0.0
  %1076 = vmatprep.subr.mxu0 0.0
  %1077 = vmatpush1.xpose.msra.mxu0 0.0
  %1078 = vmatprep.subr.mxu0 0.0
  %1079 = vmatpush1.xpose.msra.mxu0 0.0
  %1080 = vmatprep.subr.mxu0 0.0
  %1081 = vmatpush1.xpose.msra.mxu0 0.0
  %1082 = vmatprep.subr.mxu0 0.0
  %1083 = vmatpush1.xpose.msra.mxu0 0.0
  %1084 = vmatprep.subr.mxu0 0.0
  %1085 = vmatpush1.xpose.msra.mxu0 0.0
  %1086 = vmatprep.subr.mxu0 0.0
  %1087 = vmatpush1.xpose.msra.mxu0 0.0
  %1088 = vmatprep.subr.mxu0 0.0
  %1089 = vmatpush1.xpose.msra.mxu0 0.0
  %1090 = vmatprep.subr.mxu0 0.0
  %1091 = vmatpush1.xpose.msra.mxu0 0.0
  %1092 = vmatprep.subr.mxu0 0.0
  %1093 = vmatpush1.xpose.msra.mxu0 0.0
  %1094 = vmatprep.subr.mxu0 0.0
  %1095 = vmatpush1.xpose.msra.mxu0 0.0
  %1096 = vmatprep.subr.mxu0 0.0
  %1097 = vmatpush1.xpose.msra.mxu0 0.0
  %1098 = vmatprep.subr.mxu0 0.0
  %1099 = vmatpush1.xpose.msra.mxu0 0.0
  %1100 = vmatprep.subr.mxu0 0.0
  %1101 = vmatpush1.xpose.msra.mxu0 0.0
  %1102 = vmatprep.subr.mxu0 0.0
  %1103 = vmatpush1.xpose.msra.mxu0 0.0
  %1104 = vmatprep.subr.mxu0 0.0
  %1105 = vmatpush1.xpose.msra.mxu0 0.0
  %1106 = vmatprep.subr.mxu0 0.0
  %1107 = vmatpush1.xpose.msra.mxu0 0.0
  %1108 = vmatprep.subr.mxu0 0.0
  %1109 = vmatpush1.xpose.msra.mxu0 0.0
  %1110 = vmatprep.subr.mxu0 0.0
  %1111 = vmatpush1.xpose.msra.mxu0 0.0
  %1112 = vmatprep.subr.mxu0 0.0
  %1113 = vmatpush1.xpose.msra.mxu0 0.0
  %1114 = vmatprep.subr.mxu0 0.0
  %1115 = vmatpush1.xpose.msra.mxu0 0.0
  %1116 = vmatprep.subr.mxu0 0.0
  %1117 = vmatpush1.xpose.msra.mxu0 0.0
  %1118 = vmatprep.subr.mxu0 0.0
  %1119 = vmatpush1.xpose.msra.mxu0 0.0
  %1120 = vmatprep.subr.mxu0 0.0
  %1121 = vmatpush1.xpose.msra.mxu0 0.0
  %1122 = vmatprep.subr.mxu0 0.0
  %1123 = vmatpush1.xpose.msra.mxu0 0.0
  %1124 = vmatprep.mubr.f32.mxu0 0.0
  %1125 = vmatmul.mubr.f32.gmra.mrb[0].mxu0 %v1055
  %v1126 = vpop.f32.mrb[0].mxu0
  %v1127 = vadd.f32 %v1052, %v1126
  %v1128 = vpop.f32.mrb[0].mxu0
  %1129 = vdwg.mxu0
  %1131 = vrot.lane.b32.xlu0 %v1127, 88
  %v1132 = vpop.permute.xlu0 %1131
  %vm1134 = vcmask 782016
  %1135 = vst.msk [vmem:[%s3] sm:$0xf] %vm1134, %v1132
  %s1136 = scalar_lea.vmem %s0, 48
  %v1137 = vld [vmem:[%s1136] sm:$0xf]
  %s1138 = scalar_lea.vmem %s1, 96
  %v1139 = vld [vmem:[%s1138] sm:$0xff]
  %s1140 = scalar_lea.vmem %s2, 12
  %v1141 = vld [vmem:[%s1140] sm:$0x1]
  %v1143 = vlaneseq
  %v1144 = vshrl.u32 %v1143, 7
  %v1145 = vsub.s32 0, %v1144
  %v1146 = vrot.slane %v1141, %v1145
  %v1149 = vsel %vm23, %v1137, 0
  %v1152 = vsel %vm23, %v1139, 0
  %1154 = vmatprep.subr.mxu0 0.0
  %1155 = vmatpush1.xpose.msra.mxu0 %v1152
  %1156 = vmatprep.subr.mxu0 0.0
  %1157 = vmatpush1.xpose.msra.mxu0 0.0
  %1158 = vmatprep.subr.mxu0 0.0
  %1159 = vmatpush1.xpose.msra.mxu0 0.0
  %1160 = vmatprep.subr.mxu0 0.0
  %1161 = vmatpush1.xpose.msra.mxu0 0.0
  %1162 = vmatprep.subr.mxu0 0.0
  %1163 = vmatpush1.xpose.msra.mxu0 0.0
  %1164 = vmatprep.subr.mxu0 0.0
  %1165 = vmatpush1.xpose.msra.mxu0 0.0
  %1166 = vmatprep.subr.mxu0 0.0
  %1167 = vmatpush1.xpose.msra.mxu0 0.0
  %1168 = vmatprep.subr.mxu0 0.0
  %1169 = vmatpush1.xpose.msra.mxu0 0.0
  %1170 = vmatprep.subr.mxu0 0.0
  %1171 = vmatpush1.xpose.msra.mxu0 0.0
  %1172 = vmatprep.subr.mxu0 0.0
  %1173 = vmatpush1.xpose.msra.mxu0 0.0
  %1174 = vmatprep.subr.mxu0 0.0
  %1175 = vmatpush1.xpose.msra.mxu0 0.0
  %1176 = vmatprep.subr.mxu0 0.0
  %1177 = vmatpush1.xpose.msra.mxu0 0.0
  %1178 = vmatprep.subr.mxu0 0.0
  %1179 = vmatpush1.xpose.msra.mxu0 0.0
  %1180 = vmatprep.subr.mxu0 0.0
  %1181 = vmatpush1.xpose.msra.mxu0 0.0
  %1182 = vmatprep.subr.mxu0 0.0
  %1183 = vmatpush1.xpose.msra.mxu0 0.0
  %1184 = vmatprep.subr.mxu0 0.0
  %1185 = vmatpush1.xpose.msra.mxu0 0.0
  %1186 = vmatprep.subr.mxu0 0.0
  %1187 = vmatpush1.xpose.msra.mxu0 0.0
  %1188 = vmatprep.subr.mxu0 0.0
  %1189 = vmatpush1.xpose.msra.mxu0 0.0
  %1190 = vmatprep.subr.mxu0 0.0
  %1191 = vmatpush1.xpose.msra.mxu0 0.0
  %1192 = vmatprep.subr.mxu0 0.0
  %1193 = vmatpush1.xpose.msra.mxu0 0.0
  %1194 = vmatprep.subr.mxu0 0.0
  %1195 = vmatpush1.xpose.msra.mxu0 0.0
  %1196 = vmatprep.subr.mxu0 0.0
  %1197 = vmatpush1.xpose.msra.mxu0 0.0
  %1198 = vmatprep.subr.mxu0 0.0
  %1199 = vmatpush1.xpose.msra.mxu0 0.0
  %1200 = vmatprep.subr.mxu0 0.0
  %1201 = vmatpush1.xpose.msra.mxu0 0.0
  %1202 = vmatprep.subr.mxu0 0.0
  %1203 = vmatpush1.xpose.msra.mxu0 0.0
  %1204 = vmatprep.subr.mxu0 0.0
  %1205 = vmatpush1.xpose.msra.mxu0 0.0
  %1206 = vmatprep.subr.mxu0 0.0
  %1207 = vmatpush1.xpose.msra.mxu0 0.0
  %1208 = vmatprep.subr.mxu0 0.0
  %1209 = vmatpush1.xpose.msra.mxu0 0.0
  %1210 = vmatprep.subr.mxu0 0.0
  %1211 = vmatpush1.xpose.msra.mxu0 0.0
  %1212 = vmatprep.subr.mxu0 0.0
  %1213 = vmatpush1.xpose.msra.mxu0 0.0
  %1214 = vmatprep.subr.mxu0 0.0
  %1215 = vmatpush1.xpose.msra.mxu0 0.0
  %1216 = vmatprep.subr.mxu0 0.0
  %1217 = vmatpush1.xpose.msra.mxu0 0.0
  %1218 = vmatprep.mubr.f32.mxu0 0.0
  %1219 = vmatmul.mubr.f32.gmra.mrb[0].mxu0 %v1149
  %v1220 = vpop.f32.mrb[0].mxu0
  %v1221 = vadd.f32 %v1146, %v1220
  %v1222 = vpop.f32.mrb[0].mxu0
  %1223 = vdwg.mxu0
  %1225 = vrot.lane.b32.xlu0 %v1221, 96
  %v1226 = vpop.permute.xlu0 %1225
  %vm1228 = vcmask 847616
  %1229 = vst.msk [vmem:[%s3] sm:$0xf] %vm1228, %v1226
  %s1230 = scalar_lea.vmem %s0, 52
  %v1231 = vld [vmem:[%s1230] sm:$0xf]
  %s1232 = scalar_lea.vmem %s1, 104
  %v1233 = vld [vmem:[%s1232] sm:$0xff]
  %s1234 = scalar_lea.vmem %s2, 13
  %v1235 = vld [vmem:[%s1234] sm:$0x1]
  %v1237 = vlaneseq
  %v1238 = vshrl.u32 %v1237, 7
  %v1239 = vsub.s32 0, %v1238
  %v1240 = vrot.slane %v1235, %v1239
  %v1243 = vsel %vm23, %v1231, 0
  %v1246 = vsel %vm23, %v1233, 0
  %1248 = vmatprep.subr.mxu0 0.0
  %1249 = vmatpush1.xpose.msra.mxu0 %v1246
  %1250 = vmatprep.subr.mxu0 0.0
  %1251 = vmatpush1.xpose.msra.mxu0 0.0
  %1252 = vmatprep.subr.mxu0 0.0
  %1253 = vmatpush1.xpose.msra.mxu0 0.0
  %1254 = vmatprep.subr.mxu0 0.0
  %1255 = vmatpush1.xpose.msra.mxu0 0.0
  %1256 = vmatprep.subr.mxu0 0.0
  %1257 = vmatpush1.xpose.msra.mxu0 0.0
  %1258 = vmatprep.subr.mxu0 0.0
  %1259 = vmatpush1.xpose.msra.mxu0 0.0
  %1260 = vmatprep.subr.mxu0 0.0
  %1261 = vmatpush1.xpose.msra.mxu0 0.0
  %1262 = vmatprep.subr.mxu0 0.0
  %1263 = vmatpush1.xpose.msra.mxu0 0.0
  %1264 = vmatprep.subr.mxu0 0.0
  %1265 = vmatpush1.xpose.msra.mxu0 0.0
  %1266 = vmatprep.subr.mxu0 0.0
  %1267 = vmatpush1.xpose.msra.mxu0 0.0
  %1268 = vmatprep.subr.mxu0 0.0
  %1269 = vmatpush1.xpose.msra.mxu0 0.0
  %1270 = vmatprep.subr.mxu0 0.0
  %1271 = vmatpush1.xpose.msra.mxu0 0.0
  %1272 = vmatprep.subr.mxu0 0.0
  %1273 = vmatpush1.xpose.msra.mxu0 0.0
  %1274 = vmatprep.subr.mxu0 0.0
  %1275 = vmatpush1.xpose.msra.mxu0 0.0
  %1276 = vmatprep.subr.mxu0 0.0
  %1277 = vmatpush1.xpose.msra.mxu0 0.0
  %1278 = vmatprep.subr.mxu0 0.0
  %1279 = vmatpush1.xpose.msra.mxu0 0.0
  %1280 = vmatprep.subr.mxu0 0.0
  %1281 = vmatpush1.xpose.msra.mxu0 0.0
  %1282 = vmatprep.subr.mxu0 0.0
  %1283 = vmatpush1.xpose.msra.mxu0 0.0
  %1284 = vmatprep.subr.mxu0 0.0
  %1285 = vmatpush1.xpose.msra.mxu0 0.0
  %1286 = vmatprep.subr.mxu0 0.0
  %1287 = vmatpush1.xpose.msra.mxu0 0.0
  %1288 = vmatprep.subr.mxu0 0.0
  %1289 = vmatpush1.xpose.msra.mxu0 0.0
  %1290 = vmatprep.subr.mxu0 0.0
  %1291 = vmatpush1.xpose.msra.mxu0 0.0
  %1292 = vmatprep.subr.mxu0 0.0
  %1293 = vmatpush1.xpose.msra.mxu0 0.0
  %1294 = vmatprep.subr.mxu0 0.0
  %1295 = vmatpush1.xpose.msra.mxu0 0.0
  %1296 = vmatprep.subr.mxu0 0.0
  %1297 = vmatpush1.xpose.msra.mxu0 0.0
  %1298 = vmatprep.subr.mxu0 0.0
  %1299 = vmatpush1.xpose.msra.mxu0 0.0
  %1300 = vmatprep.subr.mxu0 0.0
  %1301 = vmatpush1.xpose.msra.mxu0 0.0
  %1302 = vmatprep.subr.mxu0 0.0
  %1303 = vmatpush1.xpose.msra.mxu0 0.0
  %1304 = vmatprep.subr.mxu0 0.0
  %1305 = vmatpush1.xpose.msra.mxu0 0.0
  %1306 = vmatprep.subr.mxu0 0.0
  %1307 = vmatpush1.xpose.msra.mxu0 0.0
  %1308 = vmatprep.subr.mxu0 0.0
  %1309 = vmatpush1.xpose.msra.mxu0 0.0
  %1310 = vmatprep.subr.mxu0 0.0
  %1311 = vmatpush1.xpose.msra.mxu0 0.0
  %1312 = vmatprep.mubr.f32.mxu0 0.0
  %1313 = vmatmul.mubr.f32.gmra.mrb[0].mxu0 %v1243
  %v1314 = vpop.f32.mrb[0].mxu0
  %v1315 = vadd.f32 %v1240, %v1314
  %v1316 = vpop.f32.mrb[0].mxu0
  %1317 = vdwg.mxu0
  %1319 = vrot.lane.b32.xlu0 %v1315, 104
  %v1320 = vpop.permute.xlu0 %1319
  %vm1322 = vcmask 913216
  %1323 = vst.msk [vmem:[%s3] sm:$0xf] %vm1322, %v1320
  %s1324 = scalar_lea.vmem %s0, 56
  %v1325 = vld [vmem:[%s1324] sm:$0xf]
  %s1326 = scalar_lea.vmem %s1, 112
  %v1327 = vld [vmem:[%s1326] sm:$0xff]
  %s1328 = scalar_lea.vmem %s2, 14
  %v1329 = vld [vmem:[%s1328] sm:$0x1]
  %v1331 = vlaneseq
  %v1332 = vshrl.u32 %v1331, 7
  %v1333 = vsub.s32 0, %v1332
  %v1334 = vrot.slane %v1329, %v1333
  %v1337 = vsel %vm23, %v1325, 0
  %v1340 = vsel %vm23, %v1327, 0
  %1342 = vmatprep.subr.mxu0 0.0
  %1343 = vmatpush1.xpose.msra.mxu0 %v1340
  %1344 = vmatprep.subr.mxu0 0.0
  %1345 = vmatpush1.xpose.msra.mxu0 0.0
  %1346 = vmatprep.subr.mxu0 0.0
  %1347 = vmatpush1.xpose.msra.mxu0 0.0
  %1348 = vmatprep.subr.mxu0 0.0
  %1349 = vmatpush1.xpose.msra.mxu0 0.0
  %1350 = vmatprep.subr.mxu0 0.0
  %1351 = vmatpush1.xpose.msra.mxu0 0.0
  %1352 = vmatprep.subr.mxu0 0.0
  %1353 = vmatpush1.xpose.msra.mxu0 0.0
  %1354 = vmatprep.subr.mxu0 0.0
  %1355 = vmatpush1.xpose.msra.mxu0 0.0
  %1356 = vmatprep.subr.mxu0 0.0
  %1357 = vmatpush1.xpose.msra.mxu0 0.0
  %1358 = vmatprep.subr.mxu0 0.0
  %1359 = vmatpush1.xpose.msra.mxu0 0.0
  %1360 = vmatprep.subr.mxu0 0.0
  %1361 = vmatpush1.xpose.msra.mxu0 0.0
  %1362 = vmatprep.subr.mxu0 0.0
  %1363 = vmatpush1.xpose.msra.mxu0 0.0
  %1364 = vmatprep.subr.mxu0 0.0
  %1365 = vmatpush1.xpose.msra.mxu0 0.0
  %1366 = vmatprep.subr.mxu0 0.0
  %1367 = vmatpush1.xpose.msra.mxu0 0.0
  %1368 = vmatprep.subr.mxu0 0.0
  %1369 = vmatpush1.xpose.msra.mxu0 0.0
  %1370 = vmatprep.subr.mxu0 0.0
  %1371 = vmatpush1.xpose.msra.mxu0 0.0
  %1372 = vmatprep.subr.mxu0 0.0
  %1373 = vmatpush1.xpose.msra.mxu0 0.0
  %1374 = vmatprep.subr.mxu0 0.0
  %1375 = vmatpush1.xpose.msra.mxu0 0.0
  %1376 = vmatprep.subr.mxu0 0.0
  %1377 = vmatpush1.xpose.msra.mxu0 0.0
  %1378 = vmatprep.subr.mxu0 0.0
  %1379 = vmatpush1.xpose.msra.mxu0 0.0
  %1380 = vmatprep.subr.mxu0 0.0
  %1381 = vmatpush1.xpose.msra.mxu0 0.0
  %1382 = vmatprep.subr.mxu0 0.0
  %1383 = vmatpush1.xpose.msra.mxu0 0.0
  %1384 = vmatprep.subr.mxu0 0.0
  %1385 = vmatpush1.xpose.msra.mxu0 0.0
  %1386 = vmatprep.subr.mxu0 0.0
  %1387 = vmatpush1.xpose.msra.mxu0 0.0
  %1388 = vmatprep.subr.mxu0 0.0
  %1389 = vmatpush1.xpose.msra.mxu0 0.0
  %1390 = vmatprep.subr.mxu0 0.0
  %1391 = vmatpush1.xpose.msra.mxu0 0.0
  %1392 = vmatprep.subr.mxu0 0.0
  %1393 = vmatpush1.xpose.msra.mxu0 0.0
  %1394 = vmatprep.subr.mxu0 0.0
  %1395 = vmatpush1.xpose.msra.mxu0 0.0
  %1396 = vmatprep.subr.mxu0 0.0
  %1397 = vmatpush1.xpose.msra.mxu0 0.0
  %1398 = vmatprep.subr.mxu0 0.0
  %1399 = vmatpush1.xpose.msra.mxu0 0.0
  %1400 = vmatprep.subr.mxu0 0.0
  %1401 = vmatpush1.xpose.msra.mxu0 0.0
  %1402 = vmatprep.subr.mxu0 0.0
  %1403 = vmatpush1.xpose.msra.mxu0 0.0
  %1404 = vmatprep.subr.mxu0 0.0
  %1405 = vmatpush1.xpose.msra.mxu0 0.0
  %1406 = vmatprep.mubr.f32.mxu0 0.0
  %1407 = vmatmul.mubr.f32.gmra.mrb[0].mxu0 %v1337
  %v1408 = vpop.f32.mrb[0].mxu0
  %v1409 = vadd.f32 %v1334, %v1408
  %v1410 = vpop.f32.mrb[0].mxu0
  %1411 = vdwg.mxu0
  %1413 = vrot.lane.b32.xlu0 %v1409, 112
  %v1414 = vpop.permute.xlu0 %1413
  %vm1416 = vcmask 978816
  %1417 = vst.msk [vmem:[%s3] sm:$0xf] %vm1416, %v1414
  %s1418 = scalar_lea.vmem %s0, 60
  %v1419 = vld [vmem:[%s1418] sm:$0xf]
  %s1420 = scalar_lea.vmem %s1, 120
  %v1421 = vld [vmem:[%s1420] sm:$0xff]
  %s1422 = scalar_lea.vmem %s2, 15
  %v1423 = vld [vmem:[%s1422] sm:$0x1]
  %v1425 = vlaneseq
  %v1426 = vshrl.u32 %v1425, 7
  %v1427 = vsub.s32 0, %v1426
  %v1428 = vrot.slane %v1423, %v1427
  %v1431 = vsel %vm23, %v1419, 0
  %v1434 = vsel %vm23, %v1421, 0
  %1436 = vmatprep.subr.mxu0 0.0
  %1437 = vmatpush1.xpose.msra.mxu0 %v1434
  %1438 = vmatprep.subr.mxu0 0.0
  %1439 = vmatpush1.xpose.msra.mxu0 0.0
  %1440 = vmatprep.subr.mxu0 0.0
  %1441 = vmatpush1.xpose.msra.mxu0 0.0
  %1442 = vmatprep.subr.mxu0 0.0
  %1443 = vmatpush1.xpose.msra.mxu0 0.0
  %1444 = vmatprep.subr.mxu0 0.0
  %1445 = vmatpush1.xpose.msra.mxu0 0.0
  %1446 = vmatprep.subr.mxu0 0.0
  %1447 = vmatpush1.xpose.msra.mxu0 0.0
  %1448 = vmatprep.subr.mxu0 0.0
  %1449 = vmatpush1.xpose.msra.mxu0 0.0
  %1450 = vmatprep.subr.mxu0 0.0
  %1451 = vmatpush1.xpose.msra.mxu0 0.0
  %1452 = vmatprep.subr.mxu0 0.0
  %1453 = vmatpush1.xpose.msra.mxu0 0.0
  %1454 = vmatprep.subr.mxu0 0.0
  %1455 = vmatpush1.xpose.msra.mxu0 0.0
  %1456 = vmatprep.subr.mxu0 0.0
  %1457 = vmatpush1.xpose.msra.mxu0 0.0
  %1458 = vmatprep.subr.mxu0 0.0
  %1459 = vmatpush1.xpose.msra.mxu0 0.0
  %1460 = vmatprep.subr.mxu0 0.0
  %1461 = vmatpush1.xpose.msra.mxu0 0.0
  %1462 = vmatprep.subr.mxu0 0.0
  %1463 = vmatpush1.xpose.msra.mxu0 0.0
  %1464 = vmatprep.subr.mxu0 0.0
  %1465 = vmatpush1.xpose.msra.mxu0 0.0
  %1466 = vmatprep.subr.mxu0 0.0
  %1467 = vmatpush1.xpose.msra.mxu0 0.0
  %1468 = vmatprep.subr.mxu0 0.0
  %1469 = vmatpush1.xpose.msra.mxu0 0.0
  %1470 = vmatprep.subr.mxu0 0.0
  %1471 = vmatpush1.xpose.msra.mxu0 0.0
  %1472 = vmatprep.subr.mxu0 0.0
  %1473 = vmatpush1.xpose.msra.mxu0 0.0
  %1474 = vmatprep.subr.mxu0 0.0
  %1475 = vmatpush1.xpose.msra.mxu0 0.0
  %1476 = vmatprep.subr.mxu0 0.0
  %1477 = vmatpush1.xpose.msra.mxu0 0.0
  %1478 = vmatprep.subr.mxu0 0.0
  %1479 = vmatpush1.xpose.msra.mxu0 0.0
  %1480 = vmatprep.subr.mxu0 0.0
  %1481 = vmatpush1.xpose.msra.mxu0 0.0
  %1482 = vmatprep.subr.mxu0 0.0
  %1483 = vmatpush1.xpose.msra.mxu0 0.0
  %1484 = vmatprep.subr.mxu0 0.0
  %1485 = vmatpush1.xpose.msra.mxu0 0.0
  %1486 = vmatprep.subr.mxu0 0.0
  %1487 = vmatpush1.xpose.msra.mxu0 0.0
  %1488 = vmatprep.subr.mxu0 0.0
  %1489 = vmatpush1.xpose.msra.mxu0 0.0
  %1490 = vmatprep.subr.mxu0 0.0
  %1491 = vmatpush1.xpose.msra.mxu0 0.0
  %1492 = vmatprep.subr.mxu0 0.0
  %1493 = vmatpush1.xpose.msra.mxu0 0.0
  %1494 = vmatprep.subr.mxu0 0.0
  %1495 = vmatpush1.xpose.msra.mxu0 0.0
  %1496 = vmatprep.subr.mxu0 0.0
  %1497 = vmatpush1.xpose.msra.mxu0 0.0
  %1498 = vmatprep.subr.mxu0 0.0
  %1499 = vmatpush1.xpose.msra.mxu0 0.0
  %1500 = vmatprep.mubr.f32.mxu0 0.0
  %1501 = vmatmul.mubr.f32.gmra.mrb[0].mxu0 %v1431
  %v1502 = vpop.f32.mrb[0].mxu0
  %v1503 = vadd.f32 %v1428, %v1502
  %v1504 = vpop.f32.mrb[0].mxu0
  %1505 = vdwg.mxu0
  %1507 = vrot.lane.b32.xlu0 %v1503, 120
  %v1508 = vpop.permute.xlu0 %1507
  %vm1510 = vcmask 1044416
  %1511 = vst.msk [vmem:[%s3] sm:$0xf] %vm1510, %v1508
  // Predicated region
  $region14: #{policy_conditional_mean_batched.1} parent=0 // pred_check
    _
  $region15: #{policy_conditional_mean_batched.1} parent=0 // pred_check_branch
    %1513 = sbr.rel (0) target = $region17
  $region16: #{policy_conditional_mean_batched.1} parent=0 // pred_region
    _
  $region17: #{policy_conditional_mean_batched.1} parent=0 // pred_fallthru
    _
  // Predicated region
  $region18: #{policy_conditional_mean_batched.1} parent=0 // pred_check
    _
  $region19: #{policy_conditional_mean_batched.1} parent=0 // pred_check_branch
    %1515 = sbr.rel (0) target = $region21
  $region20: #{policy_conditional_mean_batched.1} parent=0 // pred_region
    _
  $region21: #{policy_conditional_mean_batched.1} parent=0 // pred_fallthru
    _

</llo_original>
